<compile_context>
chip_gen: v6e
topology: v6e:2x2x1
jax: 0.10.0
libtpu: 0.0.40
codegen_flags: <defaults>
</compile_context>

<pallas_src>
import jax
import jax.numpy as jnp
from jax.experimental import pallas as pl
from jax.experimental.pallas import tpu as pltpu

HIDDEN = 32
NUM_LAYERS = 3
INPUT_SIZE = 1


def _rnn_kernel(
    x_ref,       # (S, B_pad, 1)        f32
    h_init_ref,  # (3, B_pad, H)        f32
    fslab_ref,   # (8, H)               f32  rows: wih0, b0, b1, b2, wout, bout
    wslab_ref,   # (5H, H)              bf16 rows: whh0.T, wih1.T, whh1.T, wih2.T, whh2.T
    out_ref,     # (S, B_pad, 1)        f32
    hout_ref,    # (3, B_pad, H)        f32
    xp_ref,      # scratch (S, B_pad, H) f32  : layer-0 input projection
    h2_ref,      # scratch (S, B_pad, H) bf16 : layer-2 hidden trace
):
    seq_len = x_ref.shape[0]
    b_pad = x_ref.shape[1]
    hidden = wslab_ref.shape[1]
    bf16 = jnp.bfloat16

    # Packed f32 row vectors: one small load, static value slices.
    fs = fslab_ref[...]
    wih0 = fs[0:1, :]                                    # W_ih^0.T  (1, H)
    b0 = fs[1:2, :]                                      # b_ih^0 + b_hh^0
    b1 = jnp.broadcast_to(fs[2:3, :], (b_pad, hidden))   # hoisted broadcasts
    b2 = jnp.broadcast_to(fs[3:4, :], (b_pad, hidden))
    wout = fs[4:5, :]                                    # out.weight row
    bout = fs[5:6, 0:1]                                  # out.bias (1, 1)

    # Loop-invariant bf16 weights (pre-transposed in the wrapper).
    whh0 = wslab_ref[0 * hidden:1 * hidden, :]
    wih1 = wslab_ref[1 * hidden:2 * hidden, :]
    whh1 = wslab_ref[2 * hidden:3 * hidden, :]
    wih2 = wslab_ref[3 * hidden:4 * hidden, :]
    whh2 = wslab_ref[4 * hidden:5 * hidden, :]

    # Layer-0 input projection for ALL timesteps in one vectorized op
    # (input_size == 1 -> broadcasted multiply; both RNN biases folded in).
    xp_ref[...] = x_ref[...] * wih0 + b0

    def dot32(a, w):
        return jnp.dot(a, w, preferred_element_type=jnp.float32)

    c0 = h_init_ref[0].astype(bf16)
    c1 = h_init_ref[1].astype(bf16)
    c2 = h_init_ref[2].astype(bf16)

    # Wavefront recurrence: step i -> layer0@t=i, layer1@t=i-1, layer2@t=i-2.
    # Boundary steps are resolved at trace time by the Python conditionals.
    for i in range(seq_len + 2):
        n0, n1, n2 = c0, c1, c2
        if i < seq_len:            # layer 0 @ t = i
            n0 = jnp.tanh(xp_ref[i] + dot32(c0, whh0)).astype(bf16)
        if 1 <= i <= seq_len:      # layer 1 @ t = i - 1
            n1 = jnp.tanh(dot32(c0, wih1) + dot32(c1, whh1) + b1).astype(bf16)
        if i >= 2:                 # layer 2 @ t = i - 2
            n2 = jnp.tanh(dot32(c1, wih2) + dot32(c2, whh2) + b2).astype(bf16)
            h2_ref[i - 2] = n2     # lane-32 store; head applied after the loop
        c0, c1, c2 = n0, n1, n2

    hout_ref[0] = c0.astype(jnp.float32)
    hout_ref[1] = c1.astype(jnp.float32)
    hout_ref[2] = c2.astype(jnp.float32)

    # Output Linear(32, 1) over the whole hidden trace in one shot (VPU mul +
    # lane reduce), instead of S degenerate N=1 matmuls in the recurrence.
    # (For S in the hundreds+, emit this lane-dense (B_pad, S) and transpose
    # in the wrapper to avoid S*B lane-width-1 masked stores.)
    out_ref[...] = (
        jnp.sum(h2_ref[...].astype(jnp.float32) * wout, axis=-1, keepdims=True)
        + bout
    )


@jax.jit
def rnn_forward(x, h_state, params):
    """x: (B, S, 1) f32, batch_first (PyTorch layout); h_state: (3, B, 32) f32."""
    B, S, _ = x.shape
    H = HIDDEN
    b_pad = max(8, -(-B // 8) * 8)   # pad batch to a sublane multiple

    # Glue: time-major + batch padding (padded rows sliced off below).
    x_tm = jnp.transpose(x, (1, 0, 2))                       # (S, B, 1)
    x_tm = jnp.pad(x_tm, ((0, 0), (0, b_pad - B), (0, 0)))   # (S, b_pad, 1)
    h0 = jnp.pad(h_state, ((0, 0), (0, b_pad - B), (0, 0)))  # (3, b_pad, H)

    def folded_bias(l):
        return (params[f"bias_ih_l{l}"] + params[f"bias_hh_l{l}"]).reshape(1, H)

    # f32 slab of row vectors: [W_ih0^T; b0; b1; b2; wout; bout; 0; 0] -> (8, H)
    fslab = jnp.concatenate(
        [
            params["weight_ih_l0"].reshape(1, H),     # W_ih^0.T (input_size==1)
            folded_bias(0),
            folded_bias(1),
            folded_bias(2),
            params["out_weight"].reshape(1, H),
            jnp.broadcast_to(params["out_bias"].reshape(1, 1), (1, H)),
            jnp.zeros((2, H), jnp.float32),
        ],
        axis=0,
    )

    # bf16 weight slab: transposed recurrent / input weights -> (5H, H).
    wslab = jnp.concatenate(
        [
            params["weight_hh_l0"].T,
            params["weight_ih_l1"].T,
            params["weight_hh_l1"].T,
            params["weight_ih_l2"].T,
            params["weight_hh_l2"].T,
        ],
        axis=0,
    ).astype(jnp.bfloat16)

    vmem = pl.BlockSpec(memory_space=pltpu.MemorySpace.VMEM)
    out_tm, hout = pl.pallas_call(
        _rnn_kernel,
        out_shape=(
            jax.ShapeDtypeStruct((S, b_pad, 1), jnp.float32),
            jax.ShapeDtypeStruct((NUM_LAYERS, b_pad, H), jnp.float32),
        ),
        in_specs=[vmem] * 4,
        out_specs=(vmem, vmem),
        scratch_shapes=[
            pltpu.VMEM((S, b_pad, H), jnp.float32),    # xp: layer-0 input proj
            pltpu.VMEM((S, b_pad, H), jnp.bfloat16),   # h2 trace for the head
        ],
    )(x_tm, h0, fslab, wslab)

    out = jnp.transpose(out_tm[:, :B, :], (1, 0, 2))   # (B, S, 1)
    h_out = hout[:, :B, :]                             # (3, B, H)
    return out, h_out


def rnn_reference(x, h_state, params):
    """Pure-JAX f32 reference matching torch.nn.RNN(tanh) + Linear semantics."""
    B, S, _ = x.shape
    h = [h_state[l] for l in range(NUM_LAYERS)]
    outs = []
    for t in range(S):
        inp = x[:, t, :]
        for l in range(NUM_LAYERS):
            wih = params[f"weight_ih_l{l}"]
            whh = params[f"weight_hh_l{l}"]
            bih = params[f"bias_ih_l{l}"]
            bhh = params[f"bias_hh_l{l}"]
            h[l] = jnp.tanh(inp @ wih.T + bih + h[l] @ whh.T + bhh)
            inp = h[l]
        outs.append(inp @ params["out_weight"].T + params["out_bias"])
    return jnp.stack(outs, axis=1), jnp.stack(h, axis=0)


def init_params(key):
    """Deterministic init mirroring PyTorch's U(-1/sqrt(H), 1/sqrt(H)) default."""
    H = HIDDEN
    bound = 1.0 / jnp.sqrt(jnp.float32(H))
    params = {}
    for l in range(NUM_LAYERS):
        in_dim = INPUT_SIZE if l == 0 else H
        key, k1, k2, k3, k4 = jax.random.split(key, 5)
        params[f"weight_ih_l{l}"] = jax.random.uniform(
            k1, (H, in_dim), jnp.float32, -bound, bound)
        params[f"weight_hh_l{l}"] = jax.random.uniform(
            k2, (H, H), jnp.float32, -bound, bound)
        params[f"bias_ih_l{l}"] = jax.random.uniform(
            k3, (H,), jnp.float32, -bound, bound)
        params[f"bias_hh_l{l}"] = jax.random.uniform(
            k4, (H,), jnp.float32, -bound, bound)
    key, k1, k2 = jax.random.split(key, 3)
    params["out_weight"] = jax.random.uniform(
        k1, (1, H), jnp.float32, -bound, bound)
    params["out_bias"] = jax.random.uniform(
        k2, (1,), jnp.float32, -bound, bound)
    return params


if __name__ == "__main__":
    key = jax.random.PRNGKey(0)
    key, kx = jax.random.split(key)

    B, S = 2, 8
    x = jax.random.normal(kx, (B, S, INPUT_SIZE), jnp.float32)
    # h_state=None in the PyTorch script -> zeros initial hidden state.
    h_state = jnp.zeros((NUM_LAYERS, B, HIDDEN), jnp.float32)

    params = init_params(key)

    out, h_out = rnn_forward(x, h_state, params)
    out, h_out = jax.block_until_ready((out, h_out))

    out_ref, h_ref = rnn_reference(x, h_state, params)

    assert out.shape == (B, S, 1), out.shape
    assert h_out.shape == (NUM_LAYERS, B, HIDDEN), h_out.shape
    # Tolerance loosened slightly vs. pure f32: the recurrence carries bf16
    # hidden states and bf16 MXU operands (f32 accumulation), perturbing
    # results by a few 1e-3.
    assert jnp.allclose(out, out_ref, atol=2e-2, rtol=2e-2)
    assert jnp.allclose(h_out, h_ref, atol=2e-2, rtol=2e-2)

    print("KERNEL_OK")
</pallas_src>

<mosaic_0001>
module attributes {stable_mosaic.version = 11 : i64} {
  func.func @_rnn_kernel(%arg0: memref<8x8x1xf32, #tpu.memory_space<vmem>>, %arg1: memref<3x8x32xf32, #tpu.memory_space<vmem>>, %arg2: memref<8x32xf32, #tpu.memory_space<vmem>>, %arg3: memref<160x32xbf16, #tpu.memory_space<vmem>>, %arg4: memref<8x8x1xf32, #tpu.memory_space<vmem>>, %arg5: memref<3x8x32xf32, #tpu.memory_space<vmem>>, %arg6: memref<8x8x32xf32, #tpu.memory_space<vmem>>, %arg7: memref<8x8x32xbf16, #tpu.memory_space<vmem>>) attributes {dimension_semantics = [], scalar_prefetch = 0 : i64, scratch_operands = 2 : i64, tpu.core_type = #tpu.core_type<tc>} {
    %c0 = arith.constant 0 : index
    %c0_0 = arith.constant 0 : index
    %0 = vector.load %arg2[%c0, %c0_0] : memref<8x32xf32, #tpu.memory_space<vmem>>, vector<8x32xf32>
    %1 = vector.extract_strided_slice %0 {offsets = [0, 0], sizes = [1, 32], strides = [1, 1]} : vector<8x32xf32> to vector<1x32xf32>
    %2 = vector.extract_strided_slice %0 {offsets = [1, 0], sizes = [1, 32], strides = [1, 1]} : vector<8x32xf32> to vector<1x32xf32>
    %3 = vector.extract_strided_slice %0 {offsets = [2, 0], sizes = [1, 32], strides = [1, 1]} : vector<8x32xf32> to vector<1x32xf32>
    %4 = vector.shape_cast %3 : vector<1x32xf32> to vector<1x32xf32>
    %5 = vector.broadcast %4 : vector<1x32xf32> to vector<8x32xf32>
    %6 = vector.extract_strided_slice %0 {offsets = [3, 0], sizes = [1, 32], strides = [1, 1]} : vector<8x32xf32> to vector<1x32xf32>
    %7 = vector.shape_cast %6 : vector<1x32xf32> to vector<1x32xf32>
    %8 = vector.broadcast %7 : vector<1x32xf32> to vector<8x32xf32>
    %9 = vector.extract_strided_slice %0 {offsets = [4, 0], sizes = [1, 32], strides = [1, 1]} : vector<8x32xf32> to vector<1x32xf32>
    %10 = vector.extract_strided_slice %0 {offsets = [5, 0], sizes = [1, 1], strides = [1, 1]} : vector<8x32xf32> to vector<1x1xf32>
    %c0_1 = arith.constant 0 : index
    %c0_2 = arith.constant 0 : index
    %11 = vector.load %arg3[%c0_1, %c0_2] : memref<160x32xbf16, #tpu.memory_space<vmem>>, vector<32x32xbf16>
    %c32 = arith.constant 32 : index
    %c0_3 = arith.constant 0 : index
    %12 = vector.load %arg3[%c32, %c0_3] : memref<160x32xbf16, #tpu.memory_space<vmem>>, vector<32x32xbf16>
    %c64 = arith.constant 64 : index
    %c0_4 = arith.constant 0 : index
    %13 = vector.load %arg3[%c64, %c0_4] : memref<160x32xbf16, #tpu.memory_space<vmem>>, vector<32x32xbf16>
    %c96 = arith.constant 96 : index
    %c0_5 = arith.constant 0 : index
    %14 = vector.load %arg3[%c96, %c0_5] : memref<160x32xbf16, #tpu.memory_space<vmem>>, vector<32x32xbf16>
    %c128 = arith.constant 128 : index
    %c0_6 = arith.constant 0 : index
    %15 = vector.load %arg3[%c128, %c0_6] : memref<160x32xbf16, #tpu.memory_space<vmem>>, vector<32x32xbf16>
    %c0_7 = arith.constant 0 : index
    %c0_8 = arith.constant 0 : index
    %c0_9 = arith.constant 0 : index
    %16 = vector.load %arg0[%c0_7, %c0_8, %c0_9] : memref<8x8x1xf32, #tpu.memory_space<vmem>>, vector<8x8x1xf32>
    %17 = vector.shape_cast %1 : vector<1x32xf32> to vector<1x1x32xf32>
    %18 = vector.broadcast %16 : vector<8x8x1xf32> to vector<8x8x32xf32>
    %19 = vector.broadcast %17 : vector<1x1x32xf32> to vector<8x8x32xf32>
    %20 = arith.mulf %18, %19 : vector<8x8x32xf32>
    %21 = vector.shape_cast %2 : vector<1x32xf32> to vector<1x1x32xf32>
    %22 = vector.broadcast %21 : vector<1x1x32xf32> to vector<8x8x32xf32>
    %23 = arith.addf %20, %22 : vector<8x8x32xf32>
    %c0_10 = arith.constant 0 : index
    %c0_11 = arith.constant 0 : index
    %c0_12 = arith.constant 0 : index
    %24 = vector.load %arg6[%c0_10, %c0_11, %c0_12] : memref<8x8x32xf32, #tpu.memory_space<vmem>>, vector<8x8x32xf32>
    tpu.vector_store %arg6[%c0_10, %c0_11, %c0_12], %23 {strides = array<i32>} : memref<8x8x32xf32, #tpu.memory_space<vmem>>, vector<8x8x32xf32>,
    %c0_13 = arith.constant 0 : index
    %c0_14 = arith.constant 0 : index
    %c0_15 = arith.constant 0 : index
    %25 = vector.load %arg1[%c0_13, %c0_14, %c0_15] : memref<3x8x32xf32, #tpu.memory_space<vmem>>, vector<1x8x32xf32>
    %26 = vector.shape_cast %25 : vector<1x8x32xf32> to vector<8x32xf32>
    %27 = arith.truncf %26 : vector<8x32xf32> to vector<8x32xbf16>
    %c1 = arith.constant 1 : index
    %c0_16 = arith.constant 0 : index
    %c0_17 = arith.constant 0 : index
    %28 = vector.load %arg1[%c1, %c0_16, %c0_17] : memref<3x8x32xf32, #tpu.memory_space<vmem>>, vector<1x8x32xf32>
    %29 = vector.shape_cast %28 : vector<1x8x32xf32> to vector<8x32xf32>
    %30 = arith.truncf %29 : vector<8x32xf32> to vector<8x32xbf16>
    %c2 = arith.constant 2 : index
    %c0_18 = arith.constant 0 : index
    %c0_19 = arith.constant 0 : index
    %31 = vector.load %arg1[%c2, %c0_18, %c0_19] : memref<3x8x32xf32, #tpu.memory_space<vmem>>, vector<1x8x32xf32>
    %32 = vector.shape_cast %31 : vector<1x8x32xf32> to vector<8x32xf32>
    %33 = arith.truncf %32 : vector<8x32xf32> to vector<8x32xbf16>
    %c0_20 = arith.constant 0 : index
    %c0_21 = arith.constant 0 : index
    %c0_22 = arith.constant 0 : index
    %34 = vector.load %arg6[%c0_20, %c0_21, %c0_22] : memref<8x8x32xf32, #tpu.memory_space<vmem>>, vector<1x8x32xf32>
    %35 = vector.shape_cast %34 : vector<1x8x32xf32> to vector<8x32xf32>
    %cst = arith.constant dense<0.000000e+00> : vector<8x32xf32>
    %36 = tpu.matmul %27, %11, %cst {dimension_numbers = #tpu.dot_dimension_numbers<[1], [0], [0], [1], [0, 0, 1, 1], [], []>} : vector<8x32xbf16>, vector<32x32xbf16>, vector<8x32xf32> -> vector<8x32xf32>
    %37 = arith.addf %35, %36 : vector<8x32xf32>
    %38 = math.tanh %37 : vector<8x32xf32>
    %39 = arith.truncf %38 : vector<8x32xf32> to vector<8x32xbf16>
    %c1_23 = arith.constant 1 : index
    %c0_24 = arith.constant 0 : index
    %c0_25 = arith.constant 0 : index
    %40 = vector.load %arg6[%c1_23, %c0_24, %c0_25] : memref<8x8x32xf32, #tpu.memory_space<vmem>>, vector<1x8x32xf32>
    %41 = vector.shape_cast %40 : vector<1x8x32xf32> to vector<8x32xf32>
    %cst_26 = arith.constant dense<0.000000e+00> : vector<8x32xf32>
    %42 = tpu.matmul %39, %11, %cst_26 {dimension_numbers = #tpu.dot_dimension_numbers<[1], [0], [0], [1], [0, 0, 1, 1], [], []>} : vector<8x32xbf16>, vector<32x32xbf16>, vector<8x32xf32> -> vector<8x32xf32>
    %43 = arith.addf %41, %42 : vector<8x32xf32>
    %44 = math.tanh %43 : vector<8x32xf32>
    %45 = arith.truncf %44 : vector<8x32xf32> to vector<8x32xbf16>
    %cst_27 = arith.constant dense<0.000000e+00> : vector<8x32xf32>
    %46 = tpu.matmul %39, %12, %cst_27 {dimension_numbers = #tpu.dot_dimension_numbers<[1], [0], [0], [1], [0, 0, 1, 1], [], []>} : vector<8x32xbf16>, vector<32x32xbf16>, vector<8x32xf32> -> vector<8x32xf32>
    %cst_28 = arith.constant dense<0.000000e+00> : vector<8x32xf32>
    %47 = tpu.matmul %30, %13, %cst_28 {dimension_numbers = #tpu.dot_dimension_numbers<[1], [0], [0], [1], [0, 0, 1, 1], [], []>} : vector<8x32xbf16>, vector<32x32xbf16>, vector<8x32xf32> -> vector<8x32xf32>
    %48 = arith.addf %46, %47 : vector<8x32xf32>
    %49 = arith.addf %48, %5 : vector<8x32xf32>
    %50 = math.tanh %49 : vector<8x32xf32>
    %51 = arith.truncf %50 : vector<8x32xf32> to vector<8x32xbf16>
    %c2_29 = arith.constant 2 : index
    %c0_30 = arith.constant 0 : index
    %c0_31 = arith.constant 0 : index
    %52 = vector.load %arg6[%c2_29, %c0_30, %c0_31] : memref<8x8x32xf32, #tpu.memory_space<vmem>>, vector<1x8x32xf32>
    %53 = vector.shape_cast %52 : vector<1x8x32xf32> to vector<8x32xf32>
    %cst_32 = arith.constant dense<0.000000e+00> : vector<8x32xf32>
    %54 = tpu.matmul %45, %11, %cst_32 {dimension_numbers = #tpu.dot_dimension_numbers<[1], [0], [0], [1], [0, 0, 1, 1], [], []>} : vector<8x32xbf16>, vector<32x32xbf16>, vector<8x32xf32> -> vector<8x32xf32>
    %55 = arith.addf %53, %54 : vector<8x32xf32>
    %56 = math.tanh %55 : vector<8x32xf32>
    %57 = arith.truncf %56 : vector<8x32xf32> to vector<8x32xbf16>
    %cst_33 = arith.constant dense<0.000000e+00> : vector<8x32xf32>
    %58 = tpu.matmul %45, %12, %cst_33 {dimension_numbers = #tpu.dot_dimension_numbers<[1], [0], [0], [1], [0, 0, 1, 1], [], []>} : vector<8x32xbf16>, vector<32x32xbf16>, vector<8x32xf32> -> vector<8x32xf32>
    %cst_34 = arith.constant dense<0.000000e+00> : vector<8x32xf32>
    %59 = tpu.matmul %51, %13, %cst_34 {dimension_numbers = #tpu.dot_dimension_numbers<[1], [0], [0], [1], [0, 0, 1, 1], [], []>} : vector<8x32xbf16>, vector<32x32xbf16>, vector<8x32xf32> -> vector<8x32xf32>
    %60 = arith.addf %58, %59 : vector<8x32xf32>
    %61 = arith.addf %60, %5 : vector<8x32xf32>
    %62 = math.tanh %61 : vector<8x32xf32>
    %63 = arith.truncf %62 : vector<8x32xf32> to vector<8x32xbf16>
    %cst_35 = arith.constant dense<0.000000e+00> : vector<8x32xf32>
    %64 = tpu.matmul %51, %14, %cst_35 {dimension_numbers = #tpu.dot_dimension_numbers<[1], [0], [0], [1], [0, 0, 1, 1], [], []>} : vector<8x32xbf16>, vector<32x32xbf16>, vector<8x32xf32> -> vector<8x32xf32>
    %cst_36 = arith.constant dense<0.000000e+00> : vector<8x32xf32>
    %65 = tpu.matmul %33, %15, %cst_36 {dimension_numbers = #tpu.dot_dimension_numbers<[1], [0], [0], [1], [0, 0, 1, 1], [], []>} : vector<8x32xbf16>, vector<32x32xbf16>, vector<8x32xf32> -> vector<8x32xf32>
    %66 = arith.addf %64, %65 : vector<8x32xf32>
    %67 = arith.addf %66, %8 : vector<8x32xf32>
    %68 = math.tanh %67 : vector<8x32xf32>
    %69 = arith.truncf %68 : vector<8x32xf32> to vector<8x32xbf16>
    %c0_37 = arith.constant 0 : index
    %c0_38 = arith.constant 0 : index
    %c0_39 = arith.constant 0 : index
    %70 = vector.load %arg7[%c0_37, %c0_38, %c0_39] : memref<8x8x32xbf16, #tpu.memory_space<vmem>>, vector<1x8x32xbf16>
    %71 = vector.shape_cast %70 : vector<1x8x32xbf16> to vector<8x32xbf16>
    %72 = vector.shape_cast %69 : vector<8x32xbf16> to vector<1x8x32xbf16>
    tpu.vector_store %arg7[%c0_37, %c0_38, %c0_39], %72 {strides = array<i32>} : memref<8x8x32xbf16, #tpu.memory_space<vmem>>, vector<1x8x32xbf16>,
    %c3 = arith.constant 3 : index
    %c0_40 = arith.constant 0 : index
    %c0_41 = arith.constant 0 : index
    %73 = vector.load %arg6[%c3, %c0_40, %c0_41] : memref<8x8x32xf32, #tpu.memory_space<vmem>>, vector<1x8x32xf32>
    %74 = vector.shape_cast %73 : vector<1x8x32xf32> to vector<8x32xf32>
    %cst_42 = arith.constant dense<0.000000e+00> : vector<8x32xf32>
    %75 = tpu.matmul %57, %11, %cst_42 {dimension_numbers = #tpu.dot_dimension_numbers<[1], [0], [0], [1], [0, 0, 1, 1], [], []>} : vector<8x32xbf16>, vector<32x32xbf16>, vector<8x32xf32> -> vector<8x32xf32>
    %76 = arith.addf %74, %75 : vector<8x32xf32>
    %77 = math.tanh %76 : vector<8x32xf32>
    %78 = arith.truncf %77 : vector<8x32xf32> to vector<8x32xbf16>
    %cst_43 = arith.constant dense<0.000000e+00> : vector<8x32xf32>
    %79 = tpu.matmul %57, %12, %cst_43 {dimension_numbers = #tpu.dot_dimension_numbers<[1], [0], [0], [1], [0, 0, 1, 1], [], []>} : vector<8x32xbf16>, vector<32x32xbf16>, vector<8x32xf32> -> vector<8x32xf32>
    %cst_44 = arith.constant dense<0.000000e+00> : vector<8x32xf32>
    %80 = tpu.matmul %63, %13, %cst_44 {dimension_numbers = #tpu.dot_dimension_numbers<[1], [0], [0], [1], [0, 0, 1, 1], [], []>} : vector<8x32xbf16>, vector<32x32xbf16>, vector<8x32xf32> -> vector<8x32xf32>
    %81 = arith.addf %79, %80 : vector<8x32xf32>
    %82 = arith.addf %81, %5 : vector<8x32xf32>
    %83 = math.tanh %82 : vector<8x32xf32>
    %84 = arith.truncf %83 : vector<8x32xf32> to vector<8x32xbf16>
    %cst_45 = arith.constant dense<0.000000e+00> : vector<8x32xf32>
    %85 = tpu.matmul %63, %14, %cst_45 {dimension_numbers = #tpu.dot_dimension_numbers<[1], [0], [0], [1], [0, 0, 1, 1], [], []>} : vector<8x32xbf16>, vector<32x32xbf16>, vector<8x32xf32> -> vector<8x32xf32>
    %cst_46 = arith.constant dense<0.000000e+00> : vector<8x32xf32>
    %86 = tpu.matmul %69, %15, %cst_46 {dimension_numbers = #tpu.dot_dimension_numbers<[1], [0], [0], [1], [0, 0, 1, 1], [], []>} : vector<8x32xbf16>, vector<32x32xbf16>, vector<8x32xf32> -> vector<8x32xf32>
    %87 = arith.addf %85, %86 : vector<8x32xf32>
    %88 = arith.addf %87, %8 : vector<8x32xf32>
    %89 = math.tanh %88 : vector<8x32xf32>
    %90 = arith.truncf %89 : vector<8x32xf32> to vector<8x32xbf16>
    %c1_47 = arith.constant 1 : index
    %c0_48 = arith.constant 0 : index
    %c0_49 = arith.constant 0 : index
    %91 = vector.load %arg7[%c1_47, %c0_48, %c0_49] : memref<8x8x32xbf16, #tpu.memory_space<vmem>>, vector<1x8x32xbf16>
    %92 = vector.shape_cast %91 : vector<1x8x32xbf16> to vector<8x32xbf16>
    %93 = vector.shape_cast %90 : vector<8x32xbf16> to vector<1x8x32xbf16>
    tpu.vector_store %arg7[%c1_47, %c0_48, %c0_49], %93 {strides = array<i32>} : memref<8x8x32xbf16, #tpu.memory_space<vmem>>, vector<1x8x32xbf16>,
    %c4 = arith.constant 4 : index
    %c0_50 = arith.constant 0 : index
    %c0_51 = arith.constant 0 : index
    %94 = vector.load %arg6[%c4, %c0_50, %c0_51] : memref<8x8x32xf32, #tpu.memory_space<vmem>>, vector<1x8x32xf32>
    %95 = vector.shape_cast %94 : vector<1x8x32xf32> to vector<8x32xf32>
    %cst_52 = arith.constant dense<0.000000e+00> : vector<8x32xf32>
    %96 = tpu.matmul %78, %11, %cst_52 {dimension_numbers = #tpu.dot_dimension_numbers<[1], [0], [0], [1], [0, 0, 1, 1], [], []>} : vector<8x32xbf16>, vector<32x32xbf16>, vector<8x32xf32> -> vector<8x32xf32>
    %97 = arith.addf %95, %96 : vector<8x32xf32>
    %98 = math.tanh %97 : vector<8x32xf32>
    %99 = arith.truncf %98 : vector<8x32xf32> to vector<8x32xbf16>
    %cst_53 = arith.constant dense<0.000000e+00> : vector<8x32xf32>
    %100 = tpu.matmul %78, %12, %cst_53 {dimension_numbers = #tpu.dot_dimension_numbers<[1], [0], [0], [1], [0, 0, 1, 1], [], []>} : vector<8x32xbf16>, vector<32x32xbf16>, vector<8x32xf32> -> vector<8x32xf32>
    %cst_54 = arith.constant dense<0.000000e+00> : vector<8x32xf32>
    %101 = tpu.matmul %84, %13, %cst_54 {dimension_numbers = #tpu.dot_dimension_numbers<[1], [0], [0], [1], [0, 0, 1, 1], [], []>} : vector<8x32xbf16>, vector<32x32xbf16>, vector<8x32xf32> -> vector<8x32xf32>
    %102 = arith.addf %100, %101 : vector<8x32xf32>
    %103 = arith.addf %102, %5 : vector<8x32xf32>
    %104 = math.tanh %103 : vector<8x32xf32>
    %105 = arith.truncf %104 : vector<8x32xf32> to vector<8x32xbf16>
    %cst_55 = arith.constant dense<0.000000e+00> : vector<8x32xf32>
    %106 = tpu.matmul %84, %14, %cst_55 {dimension_numbers = #tpu.dot_dimension_numbers<[1], [0], [0], [1], [0, 0, 1, 1], [], []>} : vector<8x32xbf16>, vector<32x32xbf16>, vector<8x32xf32> -> vector<8x32xf32>
    %cst_56 = arith.constant dense<0.000000e+00> : vector<8x32xf32>
    %107 = tpu.matmul %90, %15, %cst_56 {dimension_numbers = #tpu.dot_dimension_numbers<[1], [0], [0], [1], [0, 0, 1, 1], [], []>} : vector<8x32xbf16>, vector<32x32xbf16>, vector<8x32xf32> -> vector<8x32xf32>
    %108 = arith.addf %106, %107 : vector<8x32xf32>
    %109 = arith.addf %108, %8 : vector<8x32xf32>
    %110 = math.tanh %109 : vector<8x32xf32>
    %111 = arith.truncf %110 : vector<8x32xf32> to vector<8x32xbf16>
    %c2_57 = arith.constant 2 : index
    %c0_58 = arith.constant 0 : index
    %c0_59 = arith.constant 0 : index
    %112 = vector.load %arg7[%c2_57, %c0_58, %c0_59] : memref<8x8x32xbf16, #tpu.memory_space<vmem>>, vector<1x8x32xbf16>
    %113 = vector.shape_cast %112 : vector<1x8x32xbf16> to vector<8x32xbf16>
    %114 = vector.shape_cast %111 : vector<8x32xbf16> to vector<1x8x32xbf16>
    tpu.vector_store %arg7[%c2_57, %c0_58, %c0_59], %114 {strides = array<i32>} : memref<8x8x32xbf16, #tpu.memory_space<vmem>>, vector<1x8x32xbf16>,
    %c5 = arith.constant 5 : index
    %c0_60 = arith.constant 0 : index
    %c0_61 = arith.constant 0 : index
    %115 = vector.load %arg6[%c5, %c0_60, %c0_61] : memref<8x8x32xf32, #tpu.memory_space<vmem>>, vector<1x8x32xf32>
    %116 = vector.shape_cast %115 : vector<1x8x32xf32> to vector<8x32xf32>
    %cst_62 = arith.constant dense<0.000000e+00> : vector<8x32xf32>
    %117 = tpu.matmul %99, %11, %cst_62 {dimension_numbers = #tpu.dot_dimension_numbers<[1], [0], [0], [1], [0, 0, 1, 1], [], []>} : vector<8x32xbf16>, vector<32x32xbf16>, vector<8x32xf32> -> vector<8x32xf32>
    %118 = arith.addf %116, %117 : vector<8x32xf32>
    %119 = math.tanh %118 : vector<8x32xf32>
    %120 = arith.truncf %119 : vector<8x32xf32> to vector<8x32xbf16>
    %cst_63 = arith.constant dense<0.000000e+00> : vector<8x32xf32>
    %121 = tpu.matmul %99, %12, %cst_63 {dimension_numbers = #tpu.dot_dimension_numbers<[1], [0], [0], [1], [0, 0, 1, 1], [], []>} : vector<8x32xbf16>, vector<32x32xbf16>, vector<8x32xf32> -> vector<8x32xf32>
    %cst_64 = arith.constant dense<0.000000e+00> : vector<8x32xf32>
    %122 = tpu.matmul %105, %13, %cst_64 {dimension_numbers = #tpu.dot_dimension_numbers<[1], [0], [0], [1], [0, 0, 1, 1], [], []>} : vector<8x32xbf16>, vector<32x32xbf16>, vector<8x32xf32> -> vector<8x32xf32>
    %123 = arith.addf %121, %122 : vector<8x32xf32>
    %124 = arith.addf %123, %5 : vector<8x32xf32>
    %125 = math.tanh %124 : vector<8x32xf32>
    %126 = arith.truncf %125 : vector<8x32xf32> to vector<8x32xbf16>
    %cst_65 = arith.constant dense<0.000000e+00> : vector<8x32xf32>
    %127 = tpu.matmul %105, %14, %cst_65 {dimension_numbers = #tpu.dot_dimension_numbers<[1], [0], [0], [1], [0, 0, 1, 1], [], []>} : vector<8x32xbf16>, vector<32x32xbf16>, vector<8x32xf32> -> vector<8x32xf32>
    %cst_66 = arith.constant dense<0.000000e+00> : vector<8x32xf32>
    %128 = tpu.matmul %111, %15, %cst_66 {dimension_numbers = #tpu.dot_dimension_numbers<[1], [0], [0], [1], [0, 0, 1, 1], [], []>} : vector<8x32xbf16>, vector<32x32xbf16>, vector<8x32xf32> -> vector<8x32xf32>
    %129 = arith.addf %127, %128 : vector<8x32xf32>
    %130 = arith.addf %129, %8 : vector<8x32xf32>
    %131 = math.tanh %130 : vector<8x32xf32>
    %132 = arith.truncf %131 : vector<8x32xf32> to vector<8x32xbf16>
    %c3_67 = arith.constant 3 : index
    %c0_68 = arith.constant 0 : index
    %c0_69 = arith.constant 0 : index
    %133 = vector.load %arg7[%c3_67, %c0_68, %c0_69] : memref<8x8x32xbf16, #tpu.memory_space<vmem>>, vector<1x8x32xbf16>
    %134 = vector.shape_cast %133 : vector<1x8x32xbf16> to vector<8x32xbf16>
    %135 = vector.shape_cast %132 : vector<8x32xbf16> to vector<1x8x32xbf16>
    tpu.vector_store %arg7[%c3_67, %c0_68, %c0_69], %135 {strides = array<i32>} : memref<8x8x32xbf16, #tpu.memory_space<vmem>>, vector<1x8x32xbf16>,
    %c6 = arith.constant 6 : index
    %c0_70 = arith.constant 0 : index
    %c0_71 = arith.constant 0 : index
    %136 = vector.load %arg6[%c6, %c0_70, %c0_71] : memref<8x8x32xf32, #tpu.memory_space<vmem>>, vector<1x8x32xf32>
    %137 = vector.shape_cast %136 : vector<1x8x32xf32> to vector<8x32xf32>
    %cst_72 = arith.constant dense<0.000000e+00> : vector<8x32xf32>
    %138 = tpu.matmul %120, %11, %cst_72 {dimension_numbers = #tpu.dot_dimension_numbers<[1], [0], [0], [1], [0, 0, 1, 1], [], []>} : vector<8x32xbf16>, vector<32x32xbf16>, vector<8x32xf32> -> vector<8x32xf32>
    %139 = arith.addf %137, %138 : vector<8x32xf32>
    %140 = math.tanh %139 : vector<8x32xf32>
    %141 = arith.truncf %140 : vector<8x32xf32> to vector<8x32xbf16>
    %cst_73 = arith.constant dense<0.000000e+00> : vector<8x32xf32>
    %142 = tpu.matmul %120, %12, %cst_73 {dimension_numbers = #tpu.dot_dimension_numbers<[1], [0], [0], [1], [0, 0, 1, 1], [], []>} : vector<8x32xbf16>, vector<32x32xbf16>, vector<8x32xf32> -> vector<8x32xf32>
    %cst_74 = arith.constant dense<0.000000e+00> : vector<8x32xf32>
    %143 = tpu.matmul %126, %13, %cst_74 {dimension_numbers = #tpu.dot_dimension_numbers<[1], [0], [0], [1], [0, 0, 1, 1], [], []>} : vector<8x32xbf16>, vector<32x32xbf16>, vector<8x32xf32> -> vector<8x32xf32>
    %144 = arith.addf %142, %143 : vector<8x32xf32>
    %145 = arith.addf %144, %5 : vector<8x32xf32>
    %146 = math.tanh %145 : vector<8x32xf32>
    %147 = arith.truncf %146 : vector<8x32xf32> to vector<8x32xbf16>
    %cst_75 = arith.constant dense<0.000000e+00> : vector<8x32xf32>
    %148 = tpu.matmul %126, %14, %cst_75 {dimension_numbers = #tpu.dot_dimension_numbers<[1], [0], [0], [1], [0, 0, 1, 1], [], []>} : vector<8x32xbf16>, vector<32x32xbf16>, vector<8x32xf32> -> vector<8x32xf32>
    %cst_76 = arith.constant dense<0.000000e+00> : vector<8x32xf32>
    %149 = tpu.matmul %132, %15, %cst_76 {dimension_numbers = #tpu.dot_dimension_numbers<[1], [0], [0], [1], [0, 0, 1, 1], [], []>} : vector<8x32xbf16>, vector<32x32xbf16>, vector<8x32xf32> -> vector<8x32xf32>
    %150 = arith.addf %148, %149 : vector<8x32xf32>
    %151 = arith.addf %150, %8 : vector<8x32xf32>
    %152 = math.tanh %151 : vector<8x32xf32>
    %153 = arith.truncf %152 : vector<8x32xf32> to vector<8x32xbf16>
    %c4_77 = arith.constant 4 : index
    %c0_78 = arith.constant 0 : index
    %c0_79 = arith.constant 0 : index
    %154 = vector.load %arg7[%c4_77, %c0_78, %c0_79] : memref<8x8x32xbf16, #tpu.memory_space<vmem>>, vector<1x8x32xbf16>
    %155 = vector.shape_cast %154 : vector<1x8x32xbf16> to vector<8x32xbf16>
    %156 = vector.shape_cast %153 : vector<8x32xbf16> to vector<1x8x32xbf16>
    tpu.vector_store %arg7[%c4_77, %c0_78, %c0_79], %156 {strides = array<i32>} : memref<8x8x32xbf16, #tpu.memory_space<vmem>>, vector<1x8x32xbf16>,
    %c7 = arith.constant 7 : index
    %c0_80 = arith.constant 0 : index
    %c0_81 = arith.constant 0 : index
    %157 = vector.load %arg6[%c7, %c0_80, %c0_81] : memref<8x8x32xf32, #tpu.memory_space<vmem>>, vector<1x8x32xf32>
    %158 = vector.shape_cast %157 : vector<1x8x32xf32> to vector<8x32xf32>
    %cst_82 = arith.constant dense<0.000000e+00> : vector<8x32xf32>
    %159 = tpu.matmul %141, %11, %cst_82 {dimension_numbers = #tpu.dot_dimension_numbers<[1], [0], [0], [1], [0, 0, 1, 1], [], []>} : vector<8x32xbf16>, vector<32x32xbf16>, vector<8x32xf32> -> vector<8x32xf32>
    %160 = arith.addf %158, %159 : vector<8x32xf32>
    %161 = math.tanh %160 : vector<8x32xf32>
    %162 = arith.truncf %161 : vector<8x32xf32> to vector<8x32xbf16>
    %cst_83 = arith.constant dense<0.000000e+00> : vector<8x32xf32>
    %163 = tpu.matmul %141, %12, %cst_83 {dimension_numbers = #tpu.dot_dimension_numbers<[1], [0], [0], [1], [0, 0, 1, 1], [], []>} : vector<8x32xbf16>, vector<32x32xbf16>, vector<8x32xf32> -> vector<8x32xf32>
    %cst_84 = arith.constant dense<0.000000e+00> : vector<8x32xf32>
    %164 = tpu.matmul %147, %13, %cst_84 {dimension_numbers = #tpu.dot_dimension_numbers<[1], [0], [0], [1], [0, 0, 1, 1], [], []>} : vector<8x32xbf16>, vector<32x32xbf16>, vector<8x32xf32> -> vector<8x32xf32>
    %165 = arith.addf %163, %164 : vector<8x32xf32>
    %166 = arith.addf %165, %5 : vector<8x32xf32>
    %167 = math.tanh %166 : vector<8x32xf32>
    %168 = arith.truncf %167 : vector<8x32xf32> to vector<8x32xbf16>
    %cst_85 = arith.constant dense<0.000000e+00> : vector<8x32xf32>
    %169 = tpu.matmul %147, %14, %cst_85 {dimension_numbers = #tpu.dot_dimension_numbers<[1], [0], [0], [1], [0, 0, 1, 1], [], []>} : vector<8x32xbf16>, vector<32x32xbf16>, vector<8x32xf32> -> vector<8x32xf32>
    %cst_86 = arith.constant dense<0.000000e+00> : vector<8x32xf32>
    %170 = tpu.matmul %153, %15, %cst_86 {dimension_numbers = #tpu.dot_dimension_numbers<[1], [0], [0], [1], [0, 0, 1, 1], [], []>} : vector<8x32xbf16>, vector<32x32xbf16>, vector<8x32xf32> -> vector<8x32xf32>
    %171 = arith.addf %169, %170 : vector<8x32xf32>
    %172 = arith.addf %171, %8 : vector<8x32xf32>
    %173 = math.tanh %172 : vector<8x32xf32>
    %174 = arith.truncf %173 : vector<8x32xf32> to vector<8x32xbf16>
    %c5_87 = arith.constant 5 : index
    %c0_88 = arith.constant 0 : index
    %c0_89 = arith.constant 0 : index
    %175 = vector.load %arg7[%c5_87, %c0_88, %c0_89] : memref<8x8x32xbf16, #tpu.memory_space<vmem>>, vector<1x8x32xbf16>
    %176 = vector.shape_cast %175 : vector<1x8x32xbf16> to vector<8x32xbf16>
    %177 = vector.shape_cast %174 : vector<8x32xbf16> to vector<1x8x32xbf16>
    tpu.vector_store %arg7[%c5_87, %c0_88, %c0_89], %177 {strides = array<i32>} : memref<8x8x32xbf16, #tpu.memory_space<vmem>>, vector<1x8x32xbf16>,
    %cst_90 = arith.constant dense<0.000000e+00> : vector<8x32xf32>
    %178 = tpu.matmul %162, %12, %cst_90 {dimension_numbers = #tpu.dot_dimension_numbers<[1], [0], [0], [1], [0, 0, 1, 1], [], []>} : vector<8x32xbf16>, vector<32x32xbf16>, vector<8x32xf32> -> vector<8x32xf32>
    %cst_91 = arith.constant dense<0.000000e+00> : vector<8x32xf32>
    %179 = tpu.matmul %168, %13, %cst_91 {dimension_numbers = #tpu.dot_dimension_numbers<[1], [0], [0], [1], [0, 0, 1, 1], [], []>} : vector<8x32xbf16>, vector<32x32xbf16>, vector<8x32xf32> -> vector<8x32xf32>
    %180 = arith.addf %178, %179 : vector<8x32xf32>
    %181 = arith.addf %180, %5 : vector<8x32xf32>
    %182 = math.tanh %181 : vector<8x32xf32>
    %183 = arith.truncf %182 : vector<8x32xf32> to vector<8x32xbf16>
    %cst_92 = arith.constant dense<0.000000e+00> : vector<8x32xf32>
    %184 = tpu.matmul %168, %14, %cst_92 {dimension_numbers = #tpu.dot_dimension_numbers<[1], [0], [0], [1], [0, 0, 1, 1], [], []>} : vector<8x32xbf16>, vector<32x32xbf16>, vector<8x32xf32> -> vector<8x32xf32>
    %cst_93 = arith.constant dense<0.000000e+00> : vector<8x32xf32>
    %185 = tpu.matmul %174, %15, %cst_93 {dimension_numbers = #tpu.dot_dimension_numbers<[1], [0], [0], [1], [0, 0, 1, 1], [], []>} : vector<8x32xbf16>, vector<32x32xbf16>, vector<8x32xf32> -> vector<8x32xf32>
    %186 = arith.addf %184, %185 : vector<8x32xf32>
    %187 = arith.addf %186, %8 : vector<8x32xf32>
    %188 = math.tanh %187 : vector<8x32xf32>
    %189 = arith.truncf %188 : vector<8x32xf32> to vector<8x32xbf16>
    %c6_94 = arith.constant 6 : index
    %c0_95 = arith.constant 0 : index
    %c0_96 = arith.constant 0 : index
    %190 = vector.load %arg7[%c6_94, %c0_95, %c0_96] : memref<8x8x32xbf16, #tpu.memory_space<vmem>>, vector<1x8x32xbf16>
    %191 = vector.shape_cast %190 : vector<1x8x32xbf16> to vector<8x32xbf16>
    %192 = vector.shape_cast %189 : vector<8x32xbf16> to vector<1x8x32xbf16>
    tpu.vector_store %arg7[%c6_94, %c0_95, %c0_96], %192 {strides = array<i32>} : memref<8x8x32xbf16, #tpu.memory_space<vmem>>, vector<1x8x32xbf16>,
    %cst_97 = arith.constant dense<0.000000e+00> : vector<8x32xf32>
    %193 = tpu.matmul %183, %14, %cst_97 {dimension_numbers = #tpu.dot_dimension_numbers<[1], [0], [0], [1], [0, 0, 1, 1], [], []>} : vector<8x32xbf16>, vector<32x32xbf16>, vector<8x32xf32> -> vector<8x32xf32>
    %cst_98 = arith.constant dense<0.000000e+00> : vector<8x32xf32>
    %194 = tpu.matmul %189, %15, %cst_98 {dimension_numbers = #tpu.dot_dimension_numbers<[1], [0], [0], [1], [0, 0, 1, 1], [], []>} : vector<8x32xbf16>, vector<32x32xbf16>, vector<8x32xf32> -> vector<8x32xf32>
    %195 = arith.addf %193, %194 : vector<8x32xf32>
    %196 = arith.addf %195, %8 : vector<8x32xf32>
    %197 = math.tanh %196 : vector<8x32xf32>
    %198 = arith.truncf %197 : vector<8x32xf32> to vector<8x32xbf16>
    %c7_99 = arith.constant 7 : index
    %c0_100 = arith.constant 0 : index
    %c0_101 = arith.constant 0 : index
    %199 = vector.load %arg7[%c7_99, %c0_100, %c0_101] : memref<8x8x32xbf16, #tpu.memory_space<vmem>>, vector<1x8x32xbf16>
    %200 = vector.shape_cast %199 : vector<1x8x32xbf16> to vector<8x32xbf16>
    %201 = vector.shape_cast %198 : vector<8x32xbf16> to vector<1x8x32xbf16>
    tpu.vector_store %arg7[%c7_99, %c0_100, %c0_101], %201 {strides = array<i32>} : memref<8x8x32xbf16, #tpu.memory_space<vmem>>, vector<1x8x32xbf16>,
    %202 = arith.extf %162 : vector<8x32xbf16> to vector<8x32xf32>
    %c0_102 = arith.constant 0 : index
    %c0_103 = arith.constant 0 : index
    %c0_104 = arith.constant 0 : index
    %203 = vector.load %arg5[%c0_102, %c0_103, %c0_104] : memref<3x8x32xf32, #tpu.memory_space<vmem>>, vector<1x8x32xf32>
    %204 = vector.shape_cast %203 : vector<1x8x32xf32> to vector<8x32xf32>
    %205 = vector.shape_cast %202 : vector<8x32xf32> to vector<1x8x32xf32>
    tpu.vector_store %arg5[%c0_102, %c0_103, %c0_104], %205 {strides = array<i32>} : memref<3x8x32xf32, #tpu.memory_space<vmem>>, vector<1x8x32xf32>,
    %206 = arith.extf %183 : vector<8x32xbf16> to vector<8x32xf32>
    %c1_105 = arith.constant 1 : index
    %c0_106 = arith.constant 0 : index
    %c0_107 = arith.constant 0 : index
    %207 = vector.load %arg5[%c1_105, %c0_106, %c0_107] : memref<3x8x32xf32, #tpu.memory_space<vmem>>, vector<1x8x32xf32>
    %208 = vector.shape_cast %207 : vector<1x8x32xf32> to vector<8x32xf32>
    %209 = vector.shape_cast %206 : vector<8x32xf32> to vector<1x8x32xf32>
    tpu.vector_store %arg5[%c1_105, %c0_106, %c0_107], %209 {strides = array<i32>} : memref<3x8x32xf32, #tpu.memory_space<vmem>>, vector<1x8x32xf32>,
    %210 = arith.extf %198 : vector<8x32xbf16> to vector<8x32xf32>
    %c2_108 = arith.constant 2 : index
    %c0_109 = arith.constant 0 : index
    %c0_110 = arith.constant 0 : index
    %211 = vector.load %arg5[%c2_108, %c0_109, %c0_110] : memref<3x8x32xf32, #tpu.memory_space<vmem>>, vector<1x8x32xf32>
    %212 = vector.shape_cast %211 : vector<1x8x32xf32> to vector<8x32xf32>
    %213 = vector.shape_cast %210 : vector<8x32xf32> to vector<1x8x32xf32>
    tpu.vector_store %arg5[%c2_108, %c0_109, %c0_110], %213 {strides = array<i32>} : memref<3x8x32xf32, #tpu.memory_space<vmem>>, vector<1x8x32xf32>,
    %c0_111 = arith.constant 0 : index
    %c0_112 = arith.constant 0 : index
    %c0_113 = arith.constant 0 : index
    %214 = vector.load %arg7[%c0_111, %c0_112, %c0_113] : memref<8x8x32xbf16, #tpu.memory_space<vmem>>, vector<8x8x32xbf16>
    %215 = arith.extf %214 : vector<8x8x32xbf16> to vector<8x8x32xf32>
    %216 = vector.shape_cast %9 : vector<1x32xf32> to vector<1x1x32xf32>
    %217 = vector.broadcast %216 : vector<1x1x32xf32> to vector<8x8x32xf32>
    %218 = arith.mulf %215, %217 : vector<8x8x32xf32>
    %cst_114 = arith.constant dense<0.000000e+00> : vector<8x8xf32>
    %219 = vector.multi_reduction <add>, %218, %cst_114 [2] : vector<8x8x32xf32> to vector<8x8xf32>
    %220 = vector.shape_cast %219 : vector<8x8xf32> to vector<8x8x1xf32>
    %221 = vector.shape_cast %10 : vector<1x1xf32> to vector<1x1x1xf32>
    %222 = vector.broadcast %221 : vector<1x1x1xf32> to vector<8x8x1xf32>
    %223 = arith.addf %220, %222 : vector<8x8x1xf32>
    %c0_115 = arith.constant 0 : index
    %c0_116 = arith.constant 0 : index
    %c0_117 = arith.constant 0 : index
    %224 = vector.load %arg4[%c0_115, %c0_116, %c0_117] : memref<8x8x1xf32, #tpu.memory_space<vmem>>, vector<8x8x1xf32>
    tpu.vector_store %arg4[%c0_115, %c0_116, %c0_117], %223 {strides = array<i32>} : memref<8x8x1xf32, #tpu.memory_space<vmem>>, vector<8x8x1xf32>,
    return
  }
}

</mosaic_0001>

<llo_original>
// kernel: rnn_forward.1
$region0: #{rnn_forward.1}
  #allocation0 [shape = 'u32[]', space=smem, size = 0x4, offset = 0x4, fixed_abs, tag = 'smem constant byte address 0x4 - core index']
  #allocation1 [shape = 'u32[144,128]{1,0:T(1,128)}', space=vmem, size = 0x12000, scoped, tag = 'internal scratch']
  #allocation2 [shape = 'f32[8,8,32]{2,1,0:T(8,128)}', space=vmem, size = 0x8000, scoped, tag = 'scratch operand']
  #allocation3 [shape = 'bf16[8,8,32]{2,1,0:T(8,128)(2,1)}', space=vmem, size = 0x4000, scoped, tag = 'scratch operand']
  %s0 = inlined_call_operand.vmem [shape: f32[8,8,1], index: 0, kind: input, shape index: {}]
  %s1 = inlined_call_operand.vmem [shape: f32[3,8,32], index: 1, kind: input, shape index: {}]
  %s2 = inlined_call_operand.vmem [shape: f32[8,32], index: 2, kind: input, shape index: {}]
  %s3 = inlined_call_operand.vmem [shape: bf16[160,32], index: 3, kind: input, shape index: {}]
  %s4 = inlined_call_operand.vmem [shape: f32[8,8,1], index: 4, kind: output, shape index: {0}]
  %s5 = inlined_call_operand.vmem [shape: f32[3,8,32], index: 5, kind: output, shape index: {1}]
  %6 = xla_tuple %s4, %s5
  %s7 = sld [smem:[#allocation0]]
  $region34: #{rnn_forward.1} parent=0
    _
  %s9 = ssub.s32 1, %s7
  %s10 = scalar_select 0, %s9, %s7
  // Predicated region
  $region2: #{rnn_forward.1} parent=0 // pred_check
    _
  $region3: #{rnn_forward.1} parent=0 // pred_check_branch
    %12 = sbr.rel (0) target = $region5
  $region4: #{rnn_forward.1} parent=0 // pred_region
    _
  $region5: #{rnn_forward.1} parent=0 // pred_fallthru
    _
  // Predicated region
  $region6: #{rnn_forward.1} parent=0 // pred_check
    _
  $region7: #{rnn_forward.1} parent=0 // pred_check_branch
    %14 = sbr.rel (0) target = $region9
  $region8: #{rnn_forward.1} parent=0 // pred_region
    _
  $region9: #{rnn_forward.1} parent=0 // pred_fallthru
    _
  // Predicated region
  $region10: #{rnn_forward.1} parent=0 // pred_check
    _
  $region11: #{rnn_forward.1} parent=0 // pred_check_branch
    %16 = sbr.rel (0) target = $region13
  $region12: #{rnn_forward.1} parent=0 // pred_region
    _
  $region13: #{rnn_forward.1} parent=0 // pred_fallthru
    _
  // Predicated region
  $region14: #{rnn_forward.1} parent=0 // pred_check
    _
  $region15: #{rnn_forward.1} parent=0 // pred_check_branch
    %18 = sbr.rel (0) target = $region17
  $region16: #{rnn_forward.1} parent=0 // pred_region
    _
  $region17: #{rnn_forward.1} parent=0 // pred_fallthru
    _
  %v20 = vld [vmem:[%s2] sm:$0xff]
  %v21 = vlaneseq
  %v22 = vshrl.u32 %v21, 7
  %v23 = vsub.s32 2, %v22
  %v24 = vrot.slane %v20, %v23
  %v25 = vlaneseq
  %v26 = vshrl.u32 %v25, 7
  %v27 = vsub.s32 3, %v26
  %v28 = vrot.slane %v20, %v27
  %v29 = vld [vmem:[%s3] sm:$0xf]
  %v30 = vld [vmem:[%s3 + $0x4] sm:$0xf]
  %v31 = vld [vmem:[%s3 + $0x8] sm:$0xf]
  %v32 = vld [vmem:[%s3 + $0xc] sm:$0xf]
  %v33 = vld [vmem:[%s3 + $0x10] sm:$0xf]
  %v34 = vld [vmem:[%s3 + $0x14] sm:$0xf]
  %v35 = vld [vmem:[%s3 + $0x18] sm:$0xf]
  %v36 = vld [vmem:[%s3 + $0x1c] sm:$0xf]
  %v37 = vld [vmem:[%s3 + $0x20] sm:$0xf]
  %v38 = vld [vmem:[%s3 + $0x24] sm:$0xf]
  %v39 = vld [vmem:[%s3 + $0x28] sm:$0xf]
  %v40 = vld [vmem:[%s3 + $0x2c] sm:$0xf]
  %v41 = vld [vmem:[%s3 + $0x30] sm:$0xf]
  %v42 = vld [vmem:[%s3 + $0x34] sm:$0xf]
  %v43 = vld [vmem:[%s3 + $0x38] sm:$0xf]
  %v44 = vld [vmem:[%s3 + $0x3c] sm:$0xf]
  %v45 = vld [vmem:[%s3 + $0x40] sm:$0xf]
  %v46 = vld [vmem:[%s3 + $0x44] sm:$0xf]
  %v47 = vld [vmem:[%s3 + $0x48] sm:$0xf]
  %v48 = vld [vmem:[%s3 + $0x4c] sm:$0xf]
  %v49 = vld [vmem:[%s0] sm:$0xff]
  %v50 = vld [vmem:[%s0 + $0x8] sm:$0xff]
  %v51 = vld [vmem:[%s0 + $0x10] sm:$0xff]
  %v52 = vld [vmem:[%s0 + $0x18] sm:$0xff]
  %v53 = vld [vmem:[%s0 + $0x20] sm:$0xff]
  %v54 = vld [vmem:[%s0 + $0x28] sm:$0xff]
  %v55 = vld [vmem:[%s0 + $0x30] sm:$0xff]
  %v56 = vld [vmem:[%s0 + $0x38] sm:$0xff]
  %58 = vset.pattern.permute.xlu0 0
  %59 = vperm.xlu0 %58, %v49
  %v60 = vpop.permute.xlu0 %59
  %63 = vset.pattern.permute.xlu0 0
  %64 = vperm.xlu0 %63, %v50
  %v65 = vpop.permute.xlu0 %64
  %68 = vset.pattern.permute.xlu0 0
  %69 = vperm.xlu0 %68, %v51
  %v70 = vpop.permute.xlu0 %69
  %73 = vset.pattern.permute.xlu0 0
  %74 = vperm.xlu0 %73, %v52
  %v75 = vpop.permute.xlu0 %74
  %78 = vset.pattern.permute.xlu0 0
  %79 = vperm.xlu0 %78, %v53
  %v80 = vpop.permute.xlu0 %79
  %83 = vset.pattern.permute.xlu0 0
  %84 = vperm.xlu0 %83, %v54
  %v85 = vpop.permute.xlu0 %84
  %88 = vset.pattern.permute.xlu0 0
  %89 = vperm.xlu0 %88, %v55
  %v90 = vpop.permute.xlu0 %89
  %93 = vset.pattern.permute.xlu0 0
  %94 = vperm.xlu0 %93, %v56
  %v95 = vpop.permute.xlu0 %94
  %v97 = vlaneseq
  %v98 = vshrl.u32 %v97, 7
  %v99 = vsub.s32 0, %v98
  %v100 = vrot.slane %v20, %v99
  %v101 = vmul.f32 %v60, %v100
  %v102 = vmul.f32 %v65, %v100
  %v103 = vmul.f32 %v70, %v100
  %v104 = vmul.f32 %v75, %v100
  %v105 = vmul.f32 %v80, %v100
  %v106 = vmul.f32 %v85, %v100
  %v107 = vmul.f32 %v90, %v100
  %v108 = vmul.f32 %v95, %v100
  %v109 = vlaneseq
  %v110 = vshrl.u32 %v109, 7
  %v111 = vsub.s32 1, %v110
  %v112 = vrot.slane %v20, %v111
  %v113 = vadd.f32 %v101, %v112
  %v114 = vadd.f32 %v102, %v112
  %v115 = vadd.f32 %v103, %v112
  %v116 = vadd.f32 %v104, %v112
  %v117 = vadd.f32 %v105, %v112
  %v118 = vadd.f32 %v106, %v112
  %v119 = vadd.f32 %v107, %v112
  %v120 = vadd.f32 %v108, %v112
  %vm121 = vcmask 261120
  %122 = vst.msk [vmem:[#allocation2] sm:$0xff] %vm121, %v113
  %123 = vst.msk [vmem:[#allocation2 + $0x8] sm:$0xff] %vm121, %v114
  %124 = vst.msk [vmem:[#allocation2 + $0x10] sm:$0xff] %vm121, %v115
  %125 = vst.msk [vmem:[#allocation2 + $0x18] sm:$0xff] %vm121, %v116
  %126 = vst.msk [vmem:[#allocation2 + $0x20] sm:$0xff] %vm121, %v117
  %127 = vst.msk [vmem:[#allocation2 + $0x28] sm:$0xff] %vm121, %v118
  %128 = vst.msk [vmem:[#allocation2 + $0x30] sm:$0xff] %vm121, %v119
  %129 = vst.msk [vmem:[#allocation2 + $0x38] sm:$0xff] %vm121, %v120
  %v130 = vld [vmem:[%s1] sm:$0xff]
  %v131 = vpack.c.bf16 %v130, %v130
  %s132 = scalar_lea.vmem %s1, 8
  %v133 = vld [vmem:[%s132] sm:$0xff]
  %v134 = vpack.c.bf16 %v133, %v133
  %s135 = scalar_lea.vmem %s1, 16
  %v136 = vld [vmem:[%s135] sm:$0xff]
  %v137 = vpack.c.bf16 %v136, %v136
  %v138 = vld [vmem:[#allocation2] sm:$0xff]
  %v143 = vunpack.c.l.b16 %v29
  %v144 = vunpack.c.l.b16 %v30
  %v145 = vunpack.c.l.b16 %v31
  %v146 = vunpack.c.l.b16 %v32
  %v147 = vpack.c.b16 %v144, %v143
  %v148 = vpack.c.b16 %v146, %v145
  %v152 = vsel %vm121, %v131, 0
  %154 = vmatprep.subr.bf16.mxu0 0
  %155 = vmatpush1.bf16.msra.mxu0 0
  %156 = vmatprep.subr.bf16.mxu0 0
  %157 = vmatpush1.bf16.msra.mxu0 0
  %158 = vmatprep.subr.bf16.mxu0 0
  %159 = vmatpush1.bf16.msra.mxu0 0
  %160 = vmatprep.subr.bf16.mxu0 0
  %161 = vmatpush1.bf16.msra.mxu0 0
  %162 = vmatprep.subr.bf16.mxu0 0
  %163 = vmatpush1.bf16.msra.mxu0 0
  %164 = vmatprep.subr.bf16.mxu0 0
  %165 = vmatpush1.bf16.msra.mxu0 0
  %166 = vmatprep.subr.bf16.mxu0 0
  %167 = vmatpush1.bf16.msra.mxu0 %v148
  %168 = vmatprep.subr.bf16.mxu0 0
  %169 = vmatpush1.bf16.msra.mxu0 %v147
  %170 = vmatprep.subr.bf16.mxu0 0
  %171 = vmatpush2.bf16.msra.mxu0 0
  %172 = vmatprep.subr.bf16.mxu0 0
  %173 = vmatpush2.bf16.msra.mxu0 0
  %174 = vmatprep.subr.bf16.mxu0 0
  %175 = vmatpush2.bf16.msra.mxu0 0
  %176 = vmatprep.subr.bf16.mxu0 0
  %177 = vmatpush2.bf16.msra.mxu0 0
  %178 = vmatprep.subr.bf16.mxu0 0
  %179 = vmatpush2.bf16.msra.mxu0 0
  %180 = vmatprep.subr.bf16.mxu0 0
  %181 = vmatpush2.bf16.msra.mxu0 0
  %182 = vmatprep.subr.bf16.mxu0 0
  %183 = vmatpush2.bf16.msra.mxu0 0
  %184 = vmatprep.subr.bf16.mxu0 0
  %185 = vmatpush2.bf16.msra.mxu0 0
  %186 = vmatprep.mubr.bf16.mxu0 0
  %187 = vmatmul.mubr.bf16.gmra.mxu0 %v152
  %v188 = vpop.f32.mrf.mxu0
  %v189 = vadd.f32 0.0, %v188
  %v190 = vpop.f32.mrf.mxu0
  %v191 = vpop.f32.mrf.mxu0
  %v192 = vpop.f32.mrf.mxu0
  %193 = vdwg.mxu0
  %v194 = vadd.f32 %v138, %v189
  %v195 = vtanh.pop %v194
  %v196 = vpack.c.bf16 %v195, %v195
  %s197 = scalar_lea.vmem [#allocation2], 8
  %v198 = vld [vmem:[%s197] sm:$0xff]
  %v200 = vsel %vm121, %v196, 0
  %202 = vmatprep.subr.bf16.mxu0 0
  %203 = vmatpush1.bf16.msra.mxu0 0
  %204 = vmatprep.subr.bf16.mxu0 0
  %205 = vmatpush1.bf16.msra.mxu0 0
  %206 = vmatprep.subr.bf16.mxu0 0
  %207 = vmatpush1.bf16.msra.mxu0 0
  %208 = vmatprep.subr.bf16.mxu0 0
  %209 = vmatpush1.bf16.msra.mxu0 0
  %210 = vmatprep.subr.bf16.mxu0 0
  %211 = vmatpush1.bf16.msra.mxu0 0
  %212 = vmatprep.subr.bf16.mxu0 0
  %213 = vmatpush1.bf16.msra.mxu0 0
  %214 = vmatprep.subr.bf16.mxu0 0
  %215 = vmatpush1.bf16.msra.mxu0 %v148
  %216 = vmatprep.subr.bf16.mxu0 0
  %217 = vmatpush1.bf16.msra.mxu0 %v147
  %218 = vmatprep.subr.bf16.mxu0 0
  %219 = vmatpush2.bf16.msra.mxu0 0
  %220 = vmatprep.subr.bf16.mxu0 0
  %221 = vmatpush2.bf16.msra.mxu0 0
  %222 = vmatprep.subr.bf16.mxu0 0
  %223 = vmatpush2.bf16.msra.mxu0 0
  %224 = vmatprep.subr.bf16.mxu0 0
  %225 = vmatpush2.bf16.msra.mxu0 0
  %226 = vmatprep.subr.bf16.mxu0 0
  %227 = vmatpush2.bf16.msra.mxu0 0
  %228 = vmatprep.subr.bf16.mxu0 0
  %229 = vmatpush2.bf16.msra.mxu0 0
  %230 = vmatprep.subr.bf16.mxu0 0
  %231 = vmatpush2.bf16.msra.mxu0 0
  %232 = vmatprep.subr.bf16.mxu0 0
  %233 = vmatpush2.bf16.msra.mxu0 0
  %234 = vmatprep.mubr.bf16.mxu0 0
  %235 = vmatmul.mubr.bf16.gmra.mxu0 %v200
  %v236 = vpop.f32.mrf.mxu0
  %v237 = vadd.f32 0.0, %v236
  %v238 = vpop.f32.mrf.mxu0
  %v239 = vpop.f32.mrf.mxu0
  %v240 = vpop.f32.mrf.mxu0
  %241 = vdwg.mxu0
  %v242 = vadd.f32 %v198, %v237
  %v243 = vtanh.pop %v242
  %v244 = vpack.c.bf16 %v243, %v243
  %v249 = vunpack.c.l.b16 %v37
  %v250 = vunpack.c.l.b16 %v38
  %v251 = vunpack.c.l.b16 %v39
  %v252 = vunpack.c.l.b16 %v40
  %v253 = vpack.c.b16 %v250, %v249
  %v254 = vpack.c.b16 %v252, %v251
  %v258 = vsel %vm121, %v134, 0
  %260 = vmatprep.subr.bf16.mxu0 0
  %261 = vmatpush1.bf16.msra.mxu0 0
  %262 = vmatprep.subr.bf16.mxu0 0
  %263 = vmatpush1.bf16.msra.mxu0 0
  %264 = vmatprep.subr.bf16.mxu0 0
  %265 = vmatpush1.bf16.msra.mxu0 0
  %266 = vmatprep.subr.bf16.mxu0 0
  %267 = vmatpush1.bf16.msra.mxu0 0
  %268 = vmatprep.subr.bf16.mxu0 0
  %269 = vmatpush1.bf16.msra.mxu0 0
  %270 = vmatprep.subr.bf16.mxu0 0
  %271 = vmatpush1.bf16.msra.mxu0 0
  %272 = vmatprep.subr.bf16.mxu0 0
  %273 = vmatpush1.bf16.msra.mxu0 %v254
  %274 = vmatprep.subr.bf16.mxu0 0
  %275 = vmatpush1.bf16.msra.mxu0 %v253
  %276 = vmatprep.subr.bf16.mxu0 0
  %277 = vmatpush2.bf16.msra.mxu0 0
  %278 = vmatprep.subr.bf16.mxu0 0
  %279 = vmatpush2.bf16.msra.mxu0 0
  %280 = vmatprep.subr.bf16.mxu0 0
  %281 = vmatpush2.bf16.msra.mxu0 0
  %282 = vmatprep.subr.bf16.mxu0 0
  %283 = vmatpush2.bf16.msra.mxu0 0
  %284 = vmatprep.subr.bf16.mxu0 0
  %285 = vmatpush2.bf16.msra.mxu0 0
  %286 = vmatprep.subr.bf16.mxu0 0
  %287 = vmatpush2.bf16.msra.mxu0 0
  %288 = vmatprep.subr.bf16.mxu0 0
  %289 = vmatpush2.bf16.msra.mxu0 0
  %290 = vmatprep.subr.bf16.mxu0 0
  %291 = vmatpush2.bf16.msra.mxu0 0
  %292 = vmatprep.mubr.bf16.mxu0 0
  %293 = vmatmul.mubr.bf16.gmra.mxu0 %v258
  %v294 = vpop.f32.mrf.mxu0
  %v295 = vadd.f32 0.0, %v294
  %v296 = vpop.f32.mrf.mxu0
  %v297 = vpop.f32.mrf.mxu0
  %v298 = vpop.f32.mrf.mxu0
  %299 = vdwg.mxu0
  %v304 = vunpack.c.l.b16 %v33
  %v305 = vunpack.c.l.b16 %v34
  %v306 = vunpack.c.l.b16 %v35
  %v307 = vunpack.c.l.b16 %v36
  %v308 = vpack.c.b16 %v305, %v304
  %v309 = vpack.c.b16 %v307, %v306
  %312 = vmatprep.subr.bf16.mxu0 0
  %313 = vmatpush1.bf16.msra.mxu0 0
  %314 = vmatprep.subr.bf16.mxu0 0
  %315 = vmatpush1.bf16.msra.mxu0 0
  %316 = vmatprep.subr.bf16.mxu0 0
  %317 = vmatpush1.bf16.msra.mxu0 0
  %318 = vmatprep.subr.bf16.mxu0 0
  %319 = vmatpush1.bf16.msra.mxu0 0
  %320 = vmatprep.subr.bf16.mxu0 0
  %321 = vmatpush1.bf16.msra.mxu0 0
  %322 = vmatprep.subr.bf16.mxu0 0
  %323 = vmatpush1.bf16.msra.mxu0 0
  %324 = vmatprep.subr.bf16.mxu0 0
  %325 = vmatpush1.bf16.msra.mxu0 %v309
  %326 = vmatprep.subr.bf16.mxu0 0
  %327 = vmatpush1.bf16.msra.mxu0 %v308
  %328 = vmatprep.subr.bf16.mxu0 0
  %329 = vmatpush2.bf16.msra.mxu0 0
  %330 = vmatprep.subr.bf16.mxu0 0
  %331 = vmatpush2.bf16.msra.mxu0 0
  %332 = vmatprep.subr.bf16.mxu0 0
  %333 = vmatpush2.bf16.msra.mxu0 0
  %334 = vmatprep.subr.bf16.mxu0 0
  %335 = vmatpush2.bf16.msra.mxu0 0
  %336 = vmatprep.subr.bf16.mxu0 0
  %337 = vmatpush2.bf16.msra.mxu0 0
  %338 = vmatprep.subr.bf16.mxu0 0
  %339 = vmatpush2.bf16.msra.mxu0 0
  %340 = vmatprep.subr.bf16.mxu0 0
  %341 = vmatpush2.bf16.msra.mxu0 0
  %342 = vmatprep.subr.bf16.mxu0 0
  %343 = vmatpush2.bf16.msra.mxu0 0
  %344 = vmatprep.mubr.bf16.mxu0 0
  %345 = vmatmul.mubr.bf16.gmra.mxu0 %v200
  %v346 = vpop.f32.mrf.mxu0
  %v347 = vadd.f32 %v295, %v346
  %v348 = vpop.f32.mrf.mxu0
  %v349 = vpop.f32.mrf.mxu0
  %v350 = vpop.f32.mrf.mxu0
  %351 = vdwg.mxu0
  %v352 = vadd.f32 %v347, %v24
  %v353 = vtanh.pop %v352
  %v354 = vpack.c.bf16 %v353, %v353
  %s355 = scalar_lea.vmem [#allocation2], 16
  %v356 = vld [vmem:[%s355] sm:$0xff]
  %v358 = vsel %vm121, %v244, 0
  %360 = vmatprep.subr.bf16.mxu0 0
  %361 = vmatpush1.bf16.msra.mxu0 0
  %362 = vmatprep.subr.bf16.mxu0 0
  %363 = vmatpush1.bf16.msra.mxu0 0
  %364 = vmatprep.subr.bf16.mxu0 0
  %365 = vmatpush1.bf16.msra.mxu0 0
  %366 = vmatprep.subr.bf16.mxu0 0
  %367 = vmatpush1.bf16.msra.mxu0 0
  %368 = vmatprep.subr.bf16.mxu0 0
  %369 = vmatpush1.bf16.msra.mxu0 0
  %370 = vmatprep.subr.bf16.mxu0 0
  %371 = vmatpush1.bf16.msra.mxu0 0
  %372 = vmatprep.subr.bf16.mxu0 0
  %373 = vmatpush1.bf16.msra.mxu0 %v148
  %374 = vmatprep.subr.bf16.mxu0 0
  %375 = vmatpush1.bf16.msra.mxu0 %v147
  %376 = vmatprep.subr.bf16.mxu0 0
  %377 = vmatpush2.bf16.msra.mxu0 0
  %378 = vmatprep.subr.bf16.mxu0 0
  %379 = vmatpush2.bf16.msra.mxu0 0
  %380 = vmatprep.subr.bf16.mxu0 0
  %381 = vmatpush2.bf16.msra.mxu0 0
  %382 = vmatprep.subr.bf16.mxu0 0
  %383 = vmatpush2.bf16.msra.mxu0 0
  %384 = vmatprep.subr.bf16.mxu0 0
  %385 = vmatpush2.bf16.msra.mxu0 0
  %386 = vmatprep.subr.bf16.mxu0 0
  %387 = vmatpush2.bf16.msra.mxu0 0
  %388 = vmatprep.subr.bf16.mxu0 0
  %389 = vmatpush2.bf16.msra.mxu0 0
  %390 = vmatprep.subr.bf16.mxu0 0
  %391 = vmatpush2.bf16.msra.mxu0 0
  %392 = vmatprep.mubr.bf16.mxu0 0
  %393 = vmatmul.mubr.bf16.gmra.mxu0 %v358
  %v394 = vpop.f32.mrf.mxu0
  %v395 = vadd.f32 0.0, %v394
  %v396 = vpop.f32.mrf.mxu0
  %v397 = vpop.f32.mrf.mxu0
  %v398 = vpop.f32.mrf.mxu0
  %399 = vdwg.mxu0
  %v400 = vadd.f32 %v356, %v395
  %v401 = vtanh.pop %v400
  %v402 = vpack.c.bf16 %v401, %v401
  %v404 = vsel %vm121, %v354, 0
  %406 = vmatprep.subr.bf16.mxu0 0
  %407 = vmatpush1.bf16.msra.mxu0 0
  %408 = vmatprep.subr.bf16.mxu0 0
  %409 = vmatpush1.bf16.msra.mxu0 0
  %410 = vmatprep.subr.bf16.mxu0 0
  %411 = vmatpush1.bf16.msra.mxu0 0
  %412 = vmatprep.subr.bf16.mxu0 0
  %413 = vmatpush1.bf16.msra.mxu0 0
  %414 = vmatprep.subr.bf16.mxu0 0
  %415 = vmatpush1.bf16.msra.mxu0 0
  %416 = vmatprep.subr.bf16.mxu0 0
  %417 = vmatpush1.bf16.msra.mxu0 0
  %418 = vmatprep.subr.bf16.mxu0 0
  %419 = vmatpush1.bf16.msra.mxu0 %v254
  %420 = vmatprep.subr.bf16.mxu0 0
  %421 = vmatpush1.bf16.msra.mxu0 %v253
  %422 = vmatprep.subr.bf16.mxu0 0
  %423 = vmatpush2.bf16.msra.mxu0 0
  %424 = vmatprep.subr.bf16.mxu0 0
  %425 = vmatpush2.bf16.msra.mxu0 0
  %426 = vmatprep.subr.bf16.mxu0 0
  %427 = vmatpush2.bf16.msra.mxu0 0
  %428 = vmatprep.subr.bf16.mxu0 0
  %429 = vmatpush2.bf16.msra.mxu0 0
  %430 = vmatprep.subr.bf16.mxu0 0
  %431 = vmatpush2.bf16.msra.mxu0 0
  %432 = vmatprep.subr.bf16.mxu0 0
  %433 = vmatpush2.bf16.msra.mxu0 0
  %434 = vmatprep.subr.bf16.mxu0 0
  %435 = vmatpush2.bf16.msra.mxu0 0
  %436 = vmatprep.subr.bf16.mxu0 0
  %437 = vmatpush2.bf16.msra.mxu0 0
  %438 = vmatprep.mubr.bf16.mxu0 0
  %439 = vmatmul.mubr.bf16.gmra.mxu0 %v404
  %v440 = vpop.f32.mrf.mxu0
  %v441 = vadd.f32 0.0, %v440
  %v442 = vpop.f32.mrf.mxu0
  %v443 = vpop.f32.mrf.mxu0
  %v444 = vpop.f32.mrf.mxu0
  %445 = vdwg.mxu0
  %446 = vmatprep.subr.bf16.mxu0 0
  %447 = vmatpush1.bf16.msra.mxu0 0
  %448 = vmatprep.subr.bf16.mxu0 0
  %449 = vmatpush1.bf16.msra.mxu0 0
  %450 = vmatprep.subr.bf16.mxu0 0
  %451 = vmatpush1.bf16.msra.mxu0 0
  %452 = vmatprep.subr.bf16.mxu0 0
  %453 = vmatpush1.bf16.msra.mxu0 0
  %454 = vmatprep.subr.bf16.mxu0 0
  %455 = vmatpush1.bf16.msra.mxu0 0
  %456 = vmatprep.subr.bf16.mxu0 0
  %457 = vmatpush1.bf16.msra.mxu0 0
  %458 = vmatprep.subr.bf16.mxu0 0
  %459 = vmatpush1.bf16.msra.mxu0 %v309
  %460 = vmatprep.subr.bf16.mxu0 0
  %461 = vmatpush1.bf16.msra.mxu0 %v308
  %462 = vmatprep.subr.bf16.mxu0 0
  %463 = vmatpush2.bf16.msra.mxu0 0
  %464 = vmatprep.subr.bf16.mxu0 0
  %465 = vmatpush2.bf16.msra.mxu0 0
  %466 = vmatprep.subr.bf16.mxu0 0
  %467 = vmatpush2.bf16.msra.mxu0 0
  %468 = vmatprep.subr.bf16.mxu0 0
  %469 = vmatpush2.bf16.msra.mxu0 0
  %470 = vmatprep.subr.bf16.mxu0 0
  %471 = vmatpush2.bf16.msra.mxu0 0
  %472 = vmatprep.subr.bf16.mxu0 0
  %473 = vmatpush2.bf16.msra.mxu0 0
  %474 = vmatprep.subr.bf16.mxu0 0
  %475 = vmatpush2.bf16.msra.mxu0 0
  %476 = vmatprep.subr.bf16.mxu0 0
  %477 = vmatpush2.bf16.msra.mxu0 0
  %478 = vmatprep.mubr.bf16.mxu0 0
  %479 = vmatmul.mubr.bf16.gmra.mxu0 %v358
  %v480 = vpop.f32.mrf.mxu0
  %v481 = vadd.f32 %v441, %v480
  %v482 = vpop.f32.mrf.mxu0
  %v483 = vpop.f32.mrf.mxu0
  %v484 = vpop.f32.mrf.mxu0
  %485 = vdwg.mxu0
  %v486 = vadd.f32 %v481, %v24
  %v487 = vtanh.pop %v486
  %v488 = vpack.c.bf16 %v487, %v487
  %v493 = vunpack.c.l.b16 %v45
  %v494 = vunpack.c.l.b16 %v46
  %v495 = vunpack.c.l.b16 %v47
  %v496 = vunpack.c.l.b16 %v48
  %v497 = vpack.c.b16 %v494, %v493
  %v498 = vpack.c.b16 %v496, %v495
  %v502 = vsel %vm121, %v137, 0
  %504 = vmatprep.subr.bf16.mxu0 0
  %505 = vmatpush1.bf16.msra.mxu0 0
  %506 = vmatprep.subr.bf16.mxu0 0
  %507 = vmatpush1.bf16.msra.mxu0 0
  %508 = vmatprep.subr.bf16.mxu0 0
  %509 = vmatpush1.bf16.msra.mxu0 0
  %510 = vmatprep.subr.bf16.mxu0 0
  %511 = vmatpush1.bf16.msra.mxu0 0
  %512 = vmatprep.subr.bf16.mxu0 0
  %513 = vmatpush1.bf16.msra.mxu0 0
  %514 = vmatprep.subr.bf16.mxu0 0
  %515 = vmatpush1.bf16.msra.mxu0 0
  %516 = vmatprep.subr.bf16.mxu0 0
  %517 = vmatpush1.bf16.msra.mxu0 %v498
  %518 = vmatprep.subr.bf16.mxu0 0
  %519 = vmatpush1.bf16.msra.mxu0 %v497
  %520 = vmatprep.subr.bf16.mxu0 0
  %521 = vmatpush2.bf16.msra.mxu0 0
  %522 = vmatprep.subr.bf16.mxu0 0
  %523 = vmatpush2.bf16.msra.mxu0 0
  %524 = vmatprep.subr.bf16.mxu0 0
  %525 = vmatpush2.bf16.msra.mxu0 0
  %526 = vmatprep.subr.bf16.mxu0 0
  %527 = vmatpush2.bf16.msra.mxu0 0
  %528 = vmatprep.subr.bf16.mxu0 0
  %529 = vmatpush2.bf16.msra.mxu0 0
  %530 = vmatprep.subr.bf16.mxu0 0
  %531 = vmatpush2.bf16.msra.mxu0 0
  %532 = vmatprep.subr.bf16.mxu0 0
  %533 = vmatpush2.bf16.msra.mxu0 0
  %534 = vmatprep.subr.bf16.mxu0 0
  %535 = vmatpush2.bf16.msra.mxu0 0
  %536 = vmatprep.mubr.bf16.mxu0 0
  %537 = vmatmul.mubr.bf16.gmra.mxu0 %v502
  %v538 = vpop.f32.mrf.mxu0
  %v539 = vadd.f32 0.0, %v538
  %v540 = vpop.f32.mrf.mxu0
  %v541 = vpop.f32.mrf.mxu0
  %v542 = vpop.f32.mrf.mxu0
  %543 = vdwg.mxu0
  %v548 = vunpack.c.l.b16 %v41
  %v549 = vunpack.c.l.b16 %v42
  %v550 = vunpack.c.l.b16 %v43
  %v551 = vunpack.c.l.b16 %v44
  %v552 = vpack.c.b16 %v549, %v548
  %v553 = vpack.c.b16 %v551, %v550
  %556 = vmatprep.subr.bf16.mxu0 0
  %557 = vmatpush1.bf16.msra.mxu0 0
  %558 = vmatprep.subr.bf16.mxu0 0
  %559 = vmatpush1.bf16.msra.mxu0 0
  %560 = vmatprep.subr.bf16.mxu0 0
  %561 = vmatpush1.bf16.msra.mxu0 0
  %562 = vmatprep.subr.bf16.mxu0 0
  %563 = vmatpush1.bf16.msra.mxu0 0
  %564 = vmatprep.subr.bf16.mxu0 0
  %565 = vmatpush1.bf16.msra.mxu0 0
  %566 = vmatprep.subr.bf16.mxu0 0
  %567 = vmatpush1.bf16.msra.mxu0 0
  %568 = vmatprep.subr.bf16.mxu0 0
  %569 = vmatpush1.bf16.msra.mxu0 %v553
  %570 = vmatprep.subr.bf16.mxu0 0
  %571 = vmatpush1.bf16.msra.mxu0 %v552
  %572 = vmatprep.subr.bf16.mxu0 0
  %573 = vmatpush2.bf16.msra.mxu0 0
  %574 = vmatprep.subr.bf16.mxu0 0
  %575 = vmatpush2.bf16.msra.mxu0 0
  %576 = vmatprep.subr.bf16.mxu0 0
  %577 = vmatpush2.bf16.msra.mxu0 0
  %578 = vmatprep.subr.bf16.mxu0 0
  %579 = vmatpush2.bf16.msra.mxu0 0
  %580 = vmatprep.subr.bf16.mxu0 0
  %581 = vmatpush2.bf16.msra.mxu0 0
  %582 = vmatprep.subr.bf16.mxu0 0
  %583 = vmatpush2.bf16.msra.mxu0 0
  %584 = vmatprep.subr.bf16.mxu0 0
  %585 = vmatpush2.bf16.msra.mxu0 0
  %586 = vmatprep.subr.bf16.mxu0 0
  %587 = vmatpush2.bf16.msra.mxu0 0
  %588 = vmatprep.mubr.bf16.mxu0 0
  %589 = vmatmul.mubr.bf16.gmra.mxu0 %v404
  %v590 = vpop.f32.mrf.mxu0
  %v591 = vadd.f32 %v539, %v590
  %v592 = vpop.f32.mrf.mxu0
  %v593 = vpop.f32.mrf.mxu0
  %v594 = vpop.f32.mrf.mxu0
  %595 = vdwg.mxu0
  %v596 = vadd.f32 %v591, %v28
  %v597 = vtanh.pop %v596
  %v598 = vpack.c.bf16 %v597, %v597
  %vm599 = vcmask 257024
  %600 = vst.msk [vmem:[#allocation3] sm:$0xf] %vm599, %v598
  %s601 = scalar_lea.vmem [#allocation2], 24
  %v602 = vld [vmem:[%s601] sm:$0xff]
  %v604 = vsel %vm121, %v402, 0
  %606 = vmatprep.subr.bf16.mxu0 0
  %607 = vmatpush1.bf16.msra.mxu0 0
  %608 = vmatprep.subr.bf16.mxu0 0
  %609 = vmatpush1.bf16.msra.mxu0 0
  %610 = vmatprep.subr.bf16.mxu0 0
  %611 = vmatpush1.bf16.msra.mxu0 0
  %612 = vmatprep.subr.bf16.mxu0 0
  %613 = vmatpush1.bf16.msra.mxu0 0
  %614 = vmatprep.subr.bf16.mxu0 0
  %615 = vmatpush1.bf16.msra.mxu0 0
  %616 = vmatprep.subr.bf16.mxu0 0
  %617 = vmatpush1.bf16.msra.mxu0 0
  %618 = vmatprep.subr.bf16.mxu0 0
  %619 = vmatpush1.bf16.msra.mxu0 %v148
  %620 = vmatprep.subr.bf16.mxu0 0
  %621 = vmatpush1.bf16.msra.mxu0 %v147
  %622 = vmatprep.subr.bf16.mxu0 0
  %623 = vmatpush2.bf16.msra.mxu0 0
  %624 = vmatprep.subr.bf16.mxu0 0
  %625 = vmatpush2.bf16.msra.mxu0 0
  %626 = vmatprep.subr.bf16.mxu0 0
  %627 = vmatpush2.bf16.msra.mxu0 0
  %628 = vmatprep.subr.bf16.mxu0 0
  %629 = vmatpush2.bf16.msra.mxu0 0
  %630 = vmatprep.subr.bf16.mxu0 0
  %631 = vmatpush2.bf16.msra.mxu0 0
  %632 = vmatprep.subr.bf16.mxu0 0
  %633 = vmatpush2.bf16.msra.mxu0 0
  %634 = vmatprep.subr.bf16.mxu0 0
  %635 = vmatpush2.bf16.msra.mxu0 0
  %636 = vmatprep.subr.bf16.mxu0 0
  %637 = vmatpush2.bf16.msra.mxu0 0
  %638 = vmatprep.mubr.bf16.mxu0 0
  %639 = vmatmul.mubr.bf16.gmra.mxu0 %v604
  %v640 = vpop.f32.mrf.mxu0
  %v641 = vadd.f32 0.0, %v640
  %v642 = vpop.f32.mrf.mxu0
  %v643 = vpop.f32.mrf.mxu0
  %v644 = vpop.f32.mrf.mxu0
  %645 = vdwg.mxu0
  %v646 = vadd.f32 %v602, %v641
  %v647 = vtanh.pop %v646
  %v648 = vpack.c.bf16 %v647, %v647
  %v650 = vsel %vm121, %v488, 0
  %652 = vmatprep.subr.bf16.mxu0 0
  %653 = vmatpush1.bf16.msra.mxu0 0
  %654 = vmatprep.subr.bf16.mxu0 0
  %655 = vmatpush1.bf16.msra.mxu0 0
  %656 = vmatprep.subr.bf16.mxu0 0
  %657 = vmatpush1.bf16.msra.mxu0 0
  %658 = vmatprep.subr.bf16.mxu0 0
  %659 = vmatpush1.bf16.msra.mxu0 0
  %660 = vmatprep.subr.bf16.mxu0 0
  %661 = vmatpush1.bf16.msra.mxu0 0
  %662 = vmatprep.subr.bf16.mxu0 0
  %663 = vmatpush1.bf16.msra.mxu0 0
  %664 = vmatprep.subr.bf16.mxu0 0
  %665 = vmatpush1.bf16.msra.mxu0 %v254
  %666 = vmatprep.subr.bf16.mxu0 0
  %667 = vmatpush1.bf16.msra.mxu0 %v253
  %668 = vmatprep.subr.bf16.mxu0 0
  %669 = vmatpush2.bf16.msra.mxu0 0
  %670 = vmatprep.subr.bf16.mxu0 0
  %671 = vmatpush2.bf16.msra.mxu0 0
  %672 = vmatprep.subr.bf16.mxu0 0
  %673 = vmatpush2.bf16.msra.mxu0 0
  %674 = vmatprep.subr.bf16.mxu0 0
  %675 = vmatpush2.bf16.msra.mxu0 0
  %676 = vmatprep.subr.bf16.mxu0 0
  %677 = vmatpush2.bf16.msra.mxu0 0
  %678 = vmatprep.subr.bf16.mxu0 0
  %679 = vmatpush2.bf16.msra.mxu0 0
  %680 = vmatprep.subr.bf16.mxu0 0
  %681 = vmatpush2.bf16.msra.mxu0 0
  %682 = vmatprep.subr.bf16.mxu0 0
  %683 = vmatpush2.bf16.msra.mxu0 0
  %684 = vmatprep.mubr.bf16.mxu0 0
  %685 = vmatmul.mubr.bf16.gmra.mxu0 %v650
  %v686 = vpop.f32.mrf.mxu0
  %v687 = vadd.f32 0.0, %v686
  %v688 = vpop.f32.mrf.mxu0
  %v689 = vpop.f32.mrf.mxu0
  %v690 = vpop.f32.mrf.mxu0
  %691 = vdwg.mxu0
  %692 = vmatprep.subr.bf16.mxu0 0
  %693 = vmatpush1.bf16.msra.mxu0 0
  %694 = vmatprep.subr.bf16.mxu0 0
  %695 = vmatpush1.bf16.msra.mxu0 0
  %696 = vmatprep.subr.bf16.mxu0 0
  %697 = vmatpush1.bf16.msra.mxu0 0
  %698 = vmatprep.subr.bf16.mxu0 0
  %699 = vmatpush1.bf16.msra.mxu0 0
  %700 = vmatprep.subr.bf16.mxu0 0
  %701 = vmatpush1.bf16.msra.mxu0 0
  %702 = vmatprep.subr.bf16.mxu0 0
  %703 = vmatpush1.bf16.msra.mxu0 0
  %704 = vmatprep.subr.bf16.mxu0 0
  %705 = vmatpush1.bf16.msra.mxu0 %v309
  %706 = vmatprep.subr.bf16.mxu0 0
  %707 = vmatpush1.bf16.msra.mxu0 %v308
  %708 = vmatprep.subr.bf16.mxu0 0
  %709 = vmatpush2.bf16.msra.mxu0 0
  %710 = vmatprep.subr.bf16.mxu0 0
  %711 = vmatpush2.bf16.msra.mxu0 0
  %712 = vmatprep.subr.bf16.mxu0 0
  %713 = vmatpush2.bf16.msra.mxu0 0
  %714 = vmatprep.subr.bf16.mxu0 0
  %715 = vmatpush2.bf16.msra.mxu0 0
  %716 = vmatprep.subr.bf16.mxu0 0
  %717 = vmatpush2.bf16.msra.mxu0 0
  %718 = vmatprep.subr.bf16.mxu0 0
  %719 = vmatpush2.bf16.msra.mxu0 0
  %720 = vmatprep.subr.bf16.mxu0 0
  %721 = vmatpush2.bf16.msra.mxu0 0
  %722 = vmatprep.subr.bf16.mxu0 0
  %723 = vmatpush2.bf16.msra.mxu0 0
  %724 = vmatprep.mubr.bf16.mxu0 0
  %725 = vmatmul.mubr.bf16.gmra.mxu0 %v604
  %v726 = vpop.f32.mrf.mxu0
  %v727 = vadd.f32 %v687, %v726
  %v728 = vpop.f32.mrf.mxu0
  %v729 = vpop.f32.mrf.mxu0
  %v730 = vpop.f32.mrf.mxu0
  %731 = vdwg.mxu0
  %v732 = vadd.f32 %v727, %v24
  %v733 = vtanh.pop %v732
  %v734 = vpack.c.bf16 %v733, %v733
  %v736 = vsel %vm121, %v598, 0
  %738 = vmatprep.subr.bf16.mxu0 0
  %739 = vmatpush1.bf16.msra.mxu0 0
  %740 = vmatprep.subr.bf16.mxu0 0
  %741 = vmatpush1.bf16.msra.mxu0 0
  %742 = vmatprep.subr.bf16.mxu0 0
  %743 = vmatpush1.bf16.msra.mxu0 0
  %744 = vmatprep.subr.bf16.mxu0 0
  %745 = vmatpush1.bf16.msra.mxu0 0
  %746 = vmatprep.subr.bf16.mxu0 0
  %747 = vmatpush1.bf16.msra.mxu0 0
  %748 = vmatprep.subr.bf16.mxu0 0
  %749 = vmatpush1.bf16.msra.mxu0 0
  %750 = vmatprep.subr.bf16.mxu0 0
  %751 = vmatpush1.bf16.msra.mxu0 %v498
  %752 = vmatprep.subr.bf16.mxu0 0
  %753 = vmatpush1.bf16.msra.mxu0 %v497
  %754 = vmatprep.subr.bf16.mxu0 0
  %755 = vmatpush2.bf16.msra.mxu0 0
  %756 = vmatprep.subr.bf16.mxu0 0
  %757 = vmatpush2.bf16.msra.mxu0 0
  %758 = vmatprep.subr.bf16.mxu0 0
  %759 = vmatpush2.bf16.msra.mxu0 0
  %760 = vmatprep.subr.bf16.mxu0 0
  %761 = vmatpush2.bf16.msra.mxu0 0
  %762 = vmatprep.subr.bf16.mxu0 0
  %763 = vmatpush2.bf16.msra.mxu0 0
  %764 = vmatprep.subr.bf16.mxu0 0
  %765 = vmatpush2.bf16.msra.mxu0 0
  %766 = vmatprep.subr.bf16.mxu0 0
  %767 = vmatpush2.bf16.msra.mxu0 0
  %768 = vmatprep.subr.bf16.mxu0 0
  %769 = vmatpush2.bf16.msra.mxu0 0
  %770 = vmatprep.mubr.bf16.mxu0 0
  %771 = vmatmul.mubr.bf16.gmra.mxu0 %v736
  %v772 = vpop.f32.mrf.mxu0
  %v773 = vadd.f32 0.0, %v772
  %v774 = vpop.f32.mrf.mxu0
  %v775 = vpop.f32.mrf.mxu0
  %v776 = vpop.f32.mrf.mxu0
  %777 = vdwg.mxu0
  %778 = vmatprep.subr.bf16.mxu0 0
  %779 = vmatpush1.bf16.msra.mxu0 0
  %780 = vmatprep.subr.bf16.mxu0 0
  %781 = vmatpush1.bf16.msra.mxu0 0
  %782 = vmatprep.subr.bf16.mxu0 0
  %783 = vmatpush1.bf16.msra.mxu0 0
  %784 = vmatprep.subr.bf16.mxu0 0
  %785 = vmatpush1.bf16.msra.mxu0 0
  %786 = vmatprep.subr.bf16.mxu0 0
  %787 = vmatpush1.bf16.msra.mxu0 0
  %788 = vmatprep.subr.bf16.mxu0 0
  %789 = vmatpush1.bf16.msra.mxu0 0
  %790 = vmatprep.subr.bf16.mxu0 0
  %791 = vmatpush1.bf16.msra.mxu0 %v553
  %792 = vmatprep.subr.bf16.mxu0 0
  %793 = vmatpush1.bf16.msra.mxu0 %v552
  %794 = vmatprep.subr.bf16.mxu0 0
  %795 = vmatpush2.bf16.msra.mxu0 0
  %796 = vmatprep.subr.bf16.mxu0 0
  %797 = vmatpush2.bf16.msra.mxu0 0
  %798 = vmatprep.subr.bf16.mxu0 0
  %799 = vmatpush2.bf16.msra.mxu0 0
  %800 = vmatprep.subr.bf16.mxu0 0
  %801 = vmatpush2.bf16.msra.mxu0 0
  %802 = vmatprep.subr.bf16.mxu0 0
  %803 = vmatpush2.bf16.msra.mxu0 0
  %804 = vmatprep.subr.bf16.mxu0 0
  %805 = vmatpush2.bf16.msra.mxu0 0
  %806 = vmatprep.subr.bf16.mxu0 0
  %807 = vmatpush2.bf16.msra.mxu0 0
  %808 = vmatprep.subr.bf16.mxu0 0
  %809 = vmatpush2.bf16.msra.mxu0 0
  %810 = vmatprep.mubr.bf16.mxu0 0
  %811 = vmatmul.mubr.bf16.gmra.mxu0 %v650
  %v812 = vpop.f32.mrf.mxu0
  %v813 = vadd.f32 %v773, %v812
  %v814 = vpop.f32.mrf.mxu0
  %v815 = vpop.f32.mrf.mxu0
  %v816 = vpop.f32.mrf.mxu0
  %817 = vdwg.mxu0
  %v818 = vadd.f32 %v813, %v28
  %v819 = vtanh.pop %v818
  %v820 = vpack.c.bf16 %v819, %v819
  %s821 = scalar_lea.vmem [#allocation3], 4
  %822 = vst.msk [vmem:[%s821] sm:$0xf] %vm599, %v820
  %s823 = scalar_lea.vmem [#allocation2], 32
  %v824 = vld [vmem:[%s823] sm:$0xff]
  %v826 = vsel %vm121, %v648, 0
  %828 = vmatprep.subr.bf16.mxu0 0
  %829 = vmatpush1.bf16.msra.mxu0 0
  %830 = vmatprep.subr.bf16.mxu0 0
  %831 = vmatpush1.bf16.msra.mxu0 0
  %832 = vmatprep.subr.bf16.mxu0 0
  %833 = vmatpush1.bf16.msra.mxu0 0
  %834 = vmatprep.subr.bf16.mxu0 0
  %835 = vmatpush1.bf16.msra.mxu0 0
  %836 = vmatprep.subr.bf16.mxu0 0
  %837 = vmatpush1.bf16.msra.mxu0 0
  %838 = vmatprep.subr.bf16.mxu0 0
  %839 = vmatpush1.bf16.msra.mxu0 0
  %840 = vmatprep.subr.bf16.mxu0 0
  %841 = vmatpush1.bf16.msra.mxu0 %v148
  %842 = vmatprep.subr.bf16.mxu0 0
  %843 = vmatpush1.bf16.msra.mxu0 %v147
  %844 = vmatprep.subr.bf16.mxu0 0
  %845 = vmatpush2.bf16.msra.mxu0 0
  %846 = vmatprep.subr.bf16.mxu0 0
  %847 = vmatpush2.bf16.msra.mxu0 0
  %848 = vmatprep.subr.bf16.mxu0 0
  %849 = vmatpush2.bf16.msra.mxu0 0
  %850 = vmatprep.subr.bf16.mxu0 0
  %851 = vmatpush2.bf16.msra.mxu0 0
  %852 = vmatprep.subr.bf16.mxu0 0
  %853 = vmatpush2.bf16.msra.mxu0 0
  %854 = vmatprep.subr.bf16.mxu0 0
  %855 = vmatpush2.bf16.msra.mxu0 0
  %856 = vmatprep.subr.bf16.mxu0 0
  %857 = vmatpush2.bf16.msra.mxu0 0
  %858 = vmatprep.subr.bf16.mxu0 0
  %859 = vmatpush2.bf16.msra.mxu0 0
  %860 = vmatprep.mubr.bf16.mxu0 0
  %861 = vmatmul.mubr.bf16.gmra.mxu0 %v826
  %v862 = vpop.f32.mrf.mxu0
  %v863 = vadd.f32 0.0, %v862
  %v864 = vpop.f32.mrf.mxu0
  %v865 = vpop.f32.mrf.mxu0
  %v866 = vpop.f32.mrf.mxu0
  %867 = vdwg.mxu0
  %v868 = vadd.f32 %v824, %v863
  %v869 = vtanh.pop %v868
  %v870 = vpack.c.bf16 %v869, %v869
  %v872 = vsel %vm121, %v734, 0
  %874 = vmatprep.subr.bf16.mxu0 0
  %875 = vmatpush1.bf16.msra.mxu0 0
  %876 = vmatprep.subr.bf16.mxu0 0
  %877 = vmatpush1.bf16.msra.mxu0 0
  %878 = vmatprep.subr.bf16.mxu0 0
  %879 = vmatpush1.bf16.msra.mxu0 0
  %880 = vmatprep.subr.bf16.mxu0 0
  %881 = vmatpush1.bf16.msra.mxu0 0
  %882 = vmatprep.subr.bf16.mxu0 0
  %883 = vmatpush1.bf16.msra.mxu0 0
  %884 = vmatprep.subr.bf16.mxu0 0
  %885 = vmatpush1.bf16.msra.mxu0 0
  %886 = vmatprep.subr.bf16.mxu0 0
  %887 = vmatpush1.bf16.msra.mxu0 %v254
  %888 = vmatprep.subr.bf16.mxu0 0
  %889 = vmatpush1.bf16.msra.mxu0 %v253
  %890 = vmatprep.subr.bf16.mxu0 0
  %891 = vmatpush2.bf16.msra.mxu0 0
  %892 = vmatprep.subr.bf16.mxu0 0
  %893 = vmatpush2.bf16.msra.mxu0 0
  %894 = vmatprep.subr.bf16.mxu0 0
  %895 = vmatpush2.bf16.msra.mxu0 0
  %896 = vmatprep.subr.bf16.mxu0 0
  %897 = vmatpush2.bf16.msra.mxu0 0
  %898 = vmatprep.subr.bf16.mxu0 0
  %899 = vmatpush2.bf16.msra.mxu0 0
  %900 = vmatprep.subr.bf16.mxu0 0
  %901 = vmatpush2.bf16.msra.mxu0 0
  %902 = vmatprep.subr.bf16.mxu0 0
  %903 = vmatpush2.bf16.msra.mxu0 0
  %904 = vmatprep.subr.bf16.mxu0 0
  %905 = vmatpush2.bf16.msra.mxu0 0
  %906 = vmatprep.mubr.bf16.mxu0 0
  %907 = vmatmul.mubr.bf16.gmra.mxu0 %v872
  %v908 = vpop.f32.mrf.mxu0
  %v909 = vadd.f32 0.0, %v908
  %v910 = vpop.f32.mrf.mxu0
  %v911 = vpop.f32.mrf.mxu0
  %v912 = vpop.f32.mrf.mxu0
  %913 = vdwg.mxu0
  %914 = vmatprep.subr.bf16.mxu0 0
  %915 = vmatpush1.bf16.msra.mxu0 0
  %916 = vmatprep.subr.bf16.mxu0 0
  %917 = vmatpush1.bf16.msra.mxu0 0
  %918 = vmatprep.subr.bf16.mxu0 0
  %919 = vmatpush1.bf16.msra.mxu0 0
  %920 = vmatprep.subr.bf16.mxu0 0
  %921 = vmatpush1.bf16.msra.mxu0 0
  %922 = vmatprep.subr.bf16.mxu0 0
  %923 = vmatpush1.bf16.msra.mxu0 0
  %924 = vmatprep.subr.bf16.mxu0 0
  %925 = vmatpush1.bf16.msra.mxu0 0
  %926 = vmatprep.subr.bf16.mxu0 0
  %927 = vmatpush1.bf16.msra.mxu0 %v309
  %928 = vmatprep.subr.bf16.mxu0 0
  %929 = vmatpush1.bf16.msra.mxu0 %v308
  %930 = vmatprep.subr.bf16.mxu0 0
  %931 = vmatpush2.bf16.msra.mxu0 0
  %932 = vmatprep.subr.bf16.mxu0 0
  %933 = vmatpush2.bf16.msra.mxu0 0
  %934 = vmatprep.subr.bf16.mxu0 0
  %935 = vmatpush2.bf16.msra.mxu0 0
  %936 = vmatprep.subr.bf16.mxu0 0
  %937 = vmatpush2.bf16.msra.mxu0 0
  %938 = vmatprep.subr.bf16.mxu0 0
  %939 = vmatpush2.bf16.msra.mxu0 0
  %940 = vmatprep.subr.bf16.mxu0 0
  %941 = vmatpush2.bf16.msra.mxu0 0
  %942 = vmatprep.subr.bf16.mxu0 0
  %943 = vmatpush2.bf16.msra.mxu0 0
  %944 = vmatprep.subr.bf16.mxu0 0
  %945 = vmatpush2.bf16.msra.mxu0 0
  %946 = vmatprep.mubr.bf16.mxu0 0
  %947 = vmatmul.mubr.bf16.gmra.mxu0 %v826
  %v948 = vpop.f32.mrf.mxu0
  %v949 = vadd.f32 %v909, %v948
  %v950 = vpop.f32.mrf.mxu0
  %v951 = vpop.f32.mrf.mxu0
  %v952 = vpop.f32.mrf.mxu0
  %953 = vdwg.mxu0
  %v954 = vadd.f32 %v949, %v24
  %v955 = vtanh.pop %v954
  %v956 = vpack.c.bf16 %v955, %v955
  %v958 = vsel %vm121, %v820, 0
  %960 = vmatprep.subr.bf16.mxu0 0
  %961 = vmatpush1.bf16.msra.mxu0 0
  %962 = vmatprep.subr.bf16.mxu0 0
  %963 = vmatpush1.bf16.msra.mxu0 0
  %964 = vmatprep.subr.bf16.mxu0 0
  %965 = vmatpush1.bf16.msra.mxu0 0
  %966 = vmatprep.subr.bf16.mxu0 0
  %967 = vmatpush1.bf16.msra.mxu0 0
  %968 = vmatprep.subr.bf16.mxu0 0
  %969 = vmatpush1.bf16.msra.mxu0 0
  %970 = vmatprep.subr.bf16.mxu0 0
  %971 = vmatpush1.bf16.msra.mxu0 0
  %972 = vmatprep.subr.bf16.mxu0 0
  %973 = vmatpush1.bf16.msra.mxu0 %v498
  %974 = vmatprep.subr.bf16.mxu0 0
  %975 = vmatpush1.bf16.msra.mxu0 %v497
  %976 = vmatprep.subr.bf16.mxu0 0
  %977 = vmatpush2.bf16.msra.mxu0 0
  %978 = vmatprep.subr.bf16.mxu0 0
  %979 = vmatpush2.bf16.msra.mxu0 0
  %980 = vmatprep.subr.bf16.mxu0 0
  %981 = vmatpush2.bf16.msra.mxu0 0
  %982 = vmatprep.subr.bf16.mxu0 0
  %983 = vmatpush2.bf16.msra.mxu0 0
  %984 = vmatprep.subr.bf16.mxu0 0
  %985 = vmatpush2.bf16.msra.mxu0 0
  %986 = vmatprep.subr.bf16.mxu0 0
  %987 = vmatpush2.bf16.msra.mxu0 0
  %988 = vmatprep.subr.bf16.mxu0 0
  %989 = vmatpush2.bf16.msra.mxu0 0
  %990 = vmatprep.subr.bf16.mxu0 0
  %991 = vmatpush2.bf16.msra.mxu0 0
  %992 = vmatprep.mubr.bf16.mxu0 0
  %993 = vmatmul.mubr.bf16.gmra.mxu0 %v958
  %v994 = vpop.f32.mrf.mxu0
  %v995 = vadd.f32 0.0, %v994
  %v996 = vpop.f32.mrf.mxu0
  %v997 = vpop.f32.mrf.mxu0
  %v998 = vpop.f32.mrf.mxu0
  %999 = vdwg.mxu0
  %1000 = vmatprep.subr.bf16.mxu0 0
  %1001 = vmatpush1.bf16.msra.mxu0 0
  %1002 = vmatprep.subr.bf16.mxu0 0
  %1003 = vmatpush1.bf16.msra.mxu0 0
  %1004 = vmatprep.subr.bf16.mxu0 0
  %1005 = vmatpush1.bf16.msra.mxu0 0
  %1006 = vmatprep.subr.bf16.mxu0 0
  %1007 = vmatpush1.bf16.msra.mxu0 0
  %1008 = vmatprep.subr.bf16.mxu0 0
  %1009 = vmatpush1.bf16.msra.mxu0 0
  %1010 = vmatprep.subr.bf16.mxu0 0
  %1011 = vmatpush1.bf16.msra.mxu0 0
  %1012 = vmatprep.subr.bf16.mxu0 0
  %1013 = vmatpush1.bf16.msra.mxu0 %v553
  %1014 = vmatprep.subr.bf16.mxu0 0
  %1015 = vmatpush1.bf16.msra.mxu0 %v552
  %1016 = vmatprep.subr.bf16.mxu0 0
  %1017 = vmatpush2.bf16.msra.mxu0 0
  %1018 = vmatprep.subr.bf16.mxu0 0
  %1019 = vmatpush2.bf16.msra.mxu0 0
  %1020 = vmatprep.subr.bf16.mxu0 0
  %1021 = vmatpush2.bf16.msra.mxu0 0
  %1022 = vmatprep.subr.bf16.mxu0 0
  %1023 = vmatpush2.bf16.msra.mxu0 0
  %1024 = vmatprep.subr.bf16.mxu0 0
  %1025 = vmatpush2.bf16.msra.mxu0 0
  %1026 = vmatprep.subr.bf16.mxu0 0
  %1027 = vmatpush2.bf16.msra.mxu0 0
  %1028 = vmatprep.subr.bf16.mxu0 0
  %1029 = vmatpush2.bf16.msra.mxu0 0
  %1030 = vmatprep.subr.bf16.mxu0 0
  %1031 = vmatpush2.bf16.msra.mxu0 0
  %1032 = vmatprep.mubr.bf16.mxu0 0
  %1033 = vmatmul.mubr.bf16.gmra.mxu0 %v872
  %v1034 = vpop.f32.mrf.mxu0
  %v1035 = vadd.f32 %v995, %v1034
  %v1036 = vpop.f32.mrf.mxu0
  %v1037 = vpop.f32.mrf.mxu0
  %v1038 = vpop.f32.mrf.mxu0
  %1039 = vdwg.mxu0
  %v1040 = vadd.f32 %v1035, %v28
  %v1041 = vtanh.pop %v1040
  %v1042 = vpack.c.bf16 %v1041, %v1041
  %s1043 = scalar_lea.vmem [#allocation3], 8
  %1044 = vst.msk [vmem:[%s1043] sm:$0xf] %vm599, %v1042
  %s1045 = scalar_lea.vmem [#allocation2], 40
  %v1046 = vld [vmem:[%s1045] sm:$0xff]
  %v1048 = vsel %vm121, %v870, 0
  %1050 = vmatprep.subr.bf16.mxu0 0
  %1051 = vmatpush1.bf16.msra.mxu0 0
  %1052 = vmatprep.subr.bf16.mxu0 0
  %1053 = vmatpush1.bf16.msra.mxu0 0
  %1054 = vmatprep.subr.bf16.mxu0 0
  %1055 = vmatpush1.bf16.msra.mxu0 0
  %1056 = vmatprep.subr.bf16.mxu0 0
  %1057 = vmatpush1.bf16.msra.mxu0 0
  %1058 = vmatprep.subr.bf16.mxu0 0
  %1059 = vmatpush1.bf16.msra.mxu0 0
  %1060 = vmatprep.subr.bf16.mxu0 0
  %1061 = vmatpush1.bf16.msra.mxu0 0
  %1062 = vmatprep.subr.bf16.mxu0 0
  %1063 = vmatpush1.bf16.msra.mxu0 %v148
  %1064 = vmatprep.subr.bf16.mxu0 0
  %1065 = vmatpush1.bf16.msra.mxu0 %v147
  %1066 = vmatprep.subr.bf16.mxu0 0
  %1067 = vmatpush2.bf16.msra.mxu0 0
  %1068 = vmatprep.subr.bf16.mxu0 0
  %1069 = vmatpush2.bf16.msra.mxu0 0
  %1070 = vmatprep.subr.bf16.mxu0 0
  %1071 = vmatpush2.bf16.msra.mxu0 0
  %1072 = vmatprep.subr.bf16.mxu0 0
  %1073 = vmatpush2.bf16.msra.mxu0 0
  %1074 = vmatprep.subr.bf16.mxu0 0
  %1075 = vmatpush2.bf16.msra.mxu0 0
  %1076 = vmatprep.subr.bf16.mxu0 0
  %1077 = vmatpush2.bf16.msra.mxu0 0
  %1078 = vmatprep.subr.bf16.mxu0 0
  %1079 = vmatpush2.bf16.msra.mxu0 0
  %1080 = vmatprep.subr.bf16.mxu0 0
  %1081 = vmatpush2.bf16.msra.mxu0 0
  %1082 = vmatprep.mubr.bf16.mxu0 0
  %1083 = vmatmul.mubr.bf16.gmra.mxu0 %v1048
  %v1084 = vpop.f32.mrf.mxu0
  %v1085 = vadd.f32 0.0, %v1084
  %v1086 = vpop.f32.mrf.mxu0
  %v1087 = vpop.f32.mrf.mxu0
  %v1088 = vpop.f32.mrf.mxu0
  %1089 = vdwg.mxu0
  %v1090 = vadd.f32 %v1046, %v1085
  %v1091 = vtanh.pop %v1090
  %v1092 = vpack.c.bf16 %v1091, %v1091
  %v1094 = vsel %vm121, %v956, 0
  %1096 = vmatprep.subr.bf16.mxu0 0
  %1097 = vmatpush1.bf16.msra.mxu0 0
  %1098 = vmatprep.subr.bf16.mxu0 0
  %1099 = vmatpush1.bf16.msra.mxu0 0
  %1100 = vmatprep.subr.bf16.mxu0 0
  %1101 = vmatpush1.bf16.msra.mxu0 0
  %1102 = vmatprep.subr.bf16.mxu0 0
  %1103 = vmatpush1.bf16.msra.mxu0 0
  %1104 = vmatprep.subr.bf16.mxu0 0
  %1105 = vmatpush1.bf16.msra.mxu0 0
  %1106 = vmatprep.subr.bf16.mxu0 0
  %1107 = vmatpush1.bf16.msra.mxu0 0
  %1108 = vmatprep.subr.bf16.mxu0 0
  %1109 = vmatpush1.bf16.msra.mxu0 %v254
  %1110 = vmatprep.subr.bf16.mxu0 0
  %1111 = vmatpush1.bf16.msra.mxu0 %v253
  %1112 = vmatprep.subr.bf16.mxu0 0
  %1113 = vmatpush2.bf16.msra.mxu0 0
  %1114 = vmatprep.subr.bf16.mxu0 0
  %1115 = vmatpush2.bf16.msra.mxu0 0
  %1116 = vmatprep.subr.bf16.mxu0 0
  %1117 = vmatpush2.bf16.msra.mxu0 0
  %1118 = vmatprep.subr.bf16.mxu0 0
  %1119 = vmatpush2.bf16.msra.mxu0 0
  %1120 = vmatprep.subr.bf16.mxu0 0
  %1121 = vmatpush2.bf16.msra.mxu0 0
  %1122 = vmatprep.subr.bf16.mxu0 0
  %1123 = vmatpush2.bf16.msra.mxu0 0
  %1124 = vmatprep.subr.bf16.mxu0 0
  %1125 = vmatpush2.bf16.msra.mxu0 0
  %1126 = vmatprep.subr.bf16.mxu0 0
  %1127 = vmatpush2.bf16.msra.mxu0 0
  %1128 = vmatprep.mubr.bf16.mxu0 0
  %1129 = vmatmul.mubr.bf16.gmra.mxu0 %v1094
  %v1130 = vpop.f32.mrf.mxu0
  %v1131 = vadd.f32 0.0, %v1130
  %v1132 = vpop.f32.mrf.mxu0
  %v1133 = vpop.f32.mrf.mxu0
  %v1134 = vpop.f32.mrf.mxu0
  %1135 = vdwg.mxu0
  %1136 = vmatprep.subr.bf16.mxu0 0
  %1137 = vmatpush1.bf16.msra.mxu0 0
  %1138 = vmatprep.subr.bf16.mxu0 0
  %1139 = vmatpush1.bf16.msra.mxu0 0
  %1140 = vmatprep.subr.bf16.mxu0 0
  %1141 = vmatpush1.bf16.msra.mxu0 0
  %1142 = vmatprep.subr.bf16.mxu0 0
  %1143 = vmatpush1.bf16.msra.mxu0 0
  %1144 = vmatprep.subr.bf16.mxu0 0
  %1145 = vmatpush1.bf16.msra.mxu0 0
  %1146 = vmatprep.subr.bf16.mxu0 0
  %1147 = vmatpush1.bf16.msra.mxu0 0
  %1148 = vmatprep.subr.bf16.mxu0 0
  %1149 = vmatpush1.bf16.msra.mxu0 %v309
  %1150 = vmatprep.subr.bf16.mxu0 0
  %1151 = vmatpush1.bf16.msra.mxu0 %v308
  %1152 = vmatprep.subr.bf16.mxu0 0
  %1153 = vmatpush2.bf16.msra.mxu0 0
  %1154 = vmatprep.subr.bf16.mxu0 0
  %1155 = vmatpush2.bf16.msra.mxu0 0
  %1156 = vmatprep.subr.bf16.mxu0 0
  %1157 = vmatpush2.bf16.msra.mxu0 0
  %1158 = vmatprep.subr.bf16.mxu0 0
  %1159 = vmatpush2.bf16.msra.mxu0 0
  %1160 = vmatprep.subr.bf16.mxu0 0
  %1161 = vmatpush2.bf16.msra.mxu0 0
  %1162 = vmatprep.subr.bf16.mxu0 0
  %1163 = vmatpush2.bf16.msra.mxu0 0
  %1164 = vmatprep.subr.bf16.mxu0 0
  %1165 = vmatpush2.bf16.msra.mxu0 0
  %1166 = vmatprep.subr.bf16.mxu0 0
  %1167 = vmatpush2.bf16.msra.mxu0 0
  %1168 = vmatprep.mubr.bf16.mxu0 0
  %1169 = vmatmul.mubr.bf16.gmra.mxu0 %v1048
  %v1170 = vpop.f32.mrf.mxu0
  %v1171 = vadd.f32 %v1131, %v1170
  %v1172 = vpop.f32.mrf.mxu0
  %v1173 = vpop.f32.mrf.mxu0
  %v1174 = vpop.f32.mrf.mxu0
  %1175 = vdwg.mxu0
  %v1176 = vadd.f32 %v1171, %v24
  %v1177 = vtanh.pop %v1176
  %v1178 = vpack.c.bf16 %v1177, %v1177
  %v1180 = vsel %vm121, %v1042, 0
  %1182 = vmatprep.subr.bf16.mxu0 0
  %1183 = vmatpush1.bf16.msra.mxu0 0
  %1184 = vmatprep.subr.bf16.mxu0 0
  %1185 = vmatpush1.bf16.msra.mxu0 0
  %1186 = vmatprep.subr.bf16.mxu0 0
  %1187 = vmatpush1.bf16.msra.mxu0 0
  %1188 = vmatprep.subr.bf16.mxu0 0
  %1189 = vmatpush1.bf16.msra.mxu0 0
  %1190 = vmatprep.subr.bf16.mxu0 0
  %1191 = vmatpush1.bf16.msra.mxu0 0
  %1192 = vmatprep.subr.bf16.mxu0 0
  %1193 = vmatpush1.bf16.msra.mxu0 0
  %1194 = vmatprep.subr.bf16.mxu0 0
  %1195 = vmatpush1.bf16.msra.mxu0 %v498
  %1196 = vmatprep.subr.bf16.mxu0 0
  %1197 = vmatpush1.bf16.msra.mxu0 %v497
  %1198 = vmatprep.subr.bf16.mxu0 0
  %1199 = vmatpush2.bf16.msra.mxu0 0
  %1200 = vmatprep.subr.bf16.mxu0 0
  %1201 = vmatpush2.bf16.msra.mxu0 0
  %1202 = vmatprep.subr.bf16.mxu0 0
  %1203 = vmatpush2.bf16.msra.mxu0 0
  %1204 = vmatprep.subr.bf16.mxu0 0
  %1205 = vmatpush2.bf16.msra.mxu0 0
  %1206 = vmatprep.subr.bf16.mxu0 0
  %1207 = vmatpush2.bf16.msra.mxu0 0
  %1208 = vmatprep.subr.bf16.mxu0 0
  %1209 = vmatpush2.bf16.msra.mxu0 0
  %1210 = vmatprep.subr.bf16.mxu0 0
  %1211 = vmatpush2.bf16.msra.mxu0 0
  %1212 = vmatprep.subr.bf16.mxu0 0
  %1213 = vmatpush2.bf16.msra.mxu0 0
  %1214 = vmatprep.mubr.bf16.mxu0 0
  %1215 = vmatmul.mubr.bf16.gmra.mxu0 %v1180
  %v1216 = vpop.f32.mrf.mxu0
  %v1217 = vadd.f32 0.0, %v1216
  %v1218 = vpop.f32.mrf.mxu0
  %v1219 = vpop.f32.mrf.mxu0
  %v1220 = vpop.f32.mrf.mxu0
  %1221 = vdwg.mxu0
  %1222 = vmatprep.subr.bf16.mxu0 0
  %1223 = vmatpush1.bf16.msra.mxu0 0
  %1224 = vmatprep.subr.bf16.mxu0 0
  %1225 = vmatpush1.bf16.msra.mxu0 0
  %1226 = vmatprep.subr.bf16.mxu0 0
  %1227 = vmatpush1.bf16.msra.mxu0 0
  %1228 = vmatprep.subr.bf16.mxu0 0
  %1229 = vmatpush1.bf16.msra.mxu0 0
  %1230 = vmatprep.subr.bf16.mxu0 0
  %1231 = vmatpush1.bf16.msra.mxu0 0
  %1232 = vmatprep.subr.bf16.mxu0 0
  %1233 = vmatpush1.bf16.msra.mxu0 0
  %1234 = vmatprep.subr.bf16.mxu0 0
  %1235 = vmatpush1.bf16.msra.mxu0 %v553
  %1236 = vmatprep.subr.bf16.mxu0 0
  %1237 = vmatpush1.bf16.msra.mxu0 %v552
  %1238 = vmatprep.subr.bf16.mxu0 0
  %1239 = vmatpush2.bf16.msra.mxu0 0
  %1240 = vmatprep.subr.bf16.mxu0 0
  %1241 = vmatpush2.bf16.msra.mxu0 0
  %1242 = vmatprep.subr.bf16.mxu0 0
  %1243 = vmatpush2.bf16.msra.mxu0 0
  %1244 = vmatprep.subr.bf16.mxu0 0
  %1245 = vmatpush2.bf16.msra.mxu0 0
  %1246 = vmatprep.subr.bf16.mxu0 0
  %1247 = vmatpush2.bf16.msra.mxu0 0
  %1248 = vmatprep.subr.bf16.mxu0 0
  %1249 = vmatpush2.bf16.msra.mxu0 0
  %1250 = vmatprep.subr.bf16.mxu0 0
  %1251 = vmatpush2.bf16.msra.mxu0 0
  %1252 = vmatprep.subr.bf16.mxu0 0
  %1253 = vmatpush2.bf16.msra.mxu0 0
  %1254 = vmatprep.mubr.bf16.mxu0 0
  %1255 = vmatmul.mubr.bf16.gmra.mxu0 %v1094
  %v1256 = vpop.f32.mrf.mxu0
  %v1257 = vadd.f32 %v1217, %v1256
  %v1258 = vpop.f32.mrf.mxu0
  %v1259 = vpop.f32.mrf.mxu0
  %v1260 = vpop.f32.mrf.mxu0
  %1261 = vdwg.mxu0
  %v1262 = vadd.f32 %v1257, %v28
  %v1263 = vtanh.pop %v1262
  %v1264 = vpack.c.bf16 %v1263, %v1263
  %s1265 = scalar_lea.vmem [#allocation3], 12
  %1266 = vst.msk [vmem:[%s1265] sm:$0xf] %vm599, %v1264
  %s1267 = scalar_lea.vmem [#allocation2], 48
  %v1268 = vld [vmem:[%s1267] sm:$0xff]
  %v1270 = vsel %vm121, %v1092, 0
  %1272 = vmatprep.subr.bf16.mxu0 0
  %1273 = vmatpush1.bf16.msra.mxu0 0
  %1274 = vmatprep.subr.bf16.mxu0 0
  %1275 = vmatpush1.bf16.msra.mxu0 0
  %1276 = vmatprep.subr.bf16.mxu0 0
  %1277 = vmatpush1.bf16.msra.mxu0 0
  %1278 = vmatprep.subr.bf16.mxu0 0
  %1279 = vmatpush1.bf16.msra.mxu0 0
  %1280 = vmatprep.subr.bf16.mxu0 0
  %1281 = vmatpush1.bf16.msra.mxu0 0
  %1282 = vmatprep.subr.bf16.mxu0 0
  %1283 = vmatpush1.bf16.msra.mxu0 0
  %1284 = vmatprep.subr.bf16.mxu0 0
  %1285 = vmatpush1.bf16.msra.mxu0 %v148
  %1286 = vmatprep.subr.bf16.mxu0 0
  %1287 = vmatpush1.bf16.msra.mxu0 %v147
  %1288 = vmatprep.subr.bf16.mxu0 0
  %1289 = vmatpush2.bf16.msra.mxu0 0
  %1290 = vmatprep.subr.bf16.mxu0 0
  %1291 = vmatpush2.bf16.msra.mxu0 0
  %1292 = vmatprep.subr.bf16.mxu0 0
  %1293 = vmatpush2.bf16.msra.mxu0 0
  %1294 = vmatprep.subr.bf16.mxu0 0
  %1295 = vmatpush2.bf16.msra.mxu0 0
  %1296 = vmatprep.subr.bf16.mxu0 0
  %1297 = vmatpush2.bf16.msra.mxu0 0
  %1298 = vmatprep.subr.bf16.mxu0 0
  %1299 = vmatpush2.bf16.msra.mxu0 0
  %1300 = vmatprep.subr.bf16.mxu0 0
  %1301 = vmatpush2.bf16.msra.mxu0 0
  %1302 = vmatprep.subr.bf16.mxu0 0
  %1303 = vmatpush2.bf16.msra.mxu0 0
  %1304 = vmatprep.mubr.bf16.mxu0 0
  %1305 = vmatmul.mubr.bf16.gmra.mxu0 %v1270
  %v1306 = vpop.f32.mrf.mxu0
  %v1307 = vadd.f32 0.0, %v1306
  %v1308 = vpop.f32.mrf.mxu0
  %v1309 = vpop.f32.mrf.mxu0
  %v1310 = vpop.f32.mrf.mxu0
  %1311 = vdwg.mxu0
  %v1312 = vadd.f32 %v1268, %v1307
  %v1313 = vtanh.pop %v1312
  %v1314 = vpack.c.bf16 %v1313, %v1313
  %v1316 = vsel %vm121, %v1178, 0
  %1318 = vmatprep.subr.bf16.mxu0 0
  %1319 = vmatpush1.bf16.msra.mxu0 0
  %1320 = vmatprep.subr.bf16.mxu0 0
  %1321 = vmatpush1.bf16.msra.mxu0 0
  %1322 = vmatprep.subr.bf16.mxu0 0
  %1323 = vmatpush1.bf16.msra.mxu0 0
  %1324 = vmatprep.subr.bf16.mxu0 0
  %1325 = vmatpush1.bf16.msra.mxu0 0
  %1326 = vmatprep.subr.bf16.mxu0 0
  %1327 = vmatpush1.bf16.msra.mxu0 0
  %1328 = vmatprep.subr.bf16.mxu0 0
  %1329 = vmatpush1.bf16.msra.mxu0 0
  %1330 = vmatprep.subr.bf16.mxu0 0
  %1331 = vmatpush1.bf16.msra.mxu0 %v254
  %1332 = vmatprep.subr.bf16.mxu0 0
  %1333 = vmatpush1.bf16.msra.mxu0 %v253
  %1334 = vmatprep.subr.bf16.mxu0 0
  %1335 = vmatpush2.bf16.msra.mxu0 0
  %1336 = vmatprep.subr.bf16.mxu0 0
  %1337 = vmatpush2.bf16.msra.mxu0 0
  %1338 = vmatprep.subr.bf16.mxu0 0
  %1339 = vmatpush2.bf16.msra.mxu0 0
  %1340 = vmatprep.subr.bf16.mxu0 0
  %1341 = vmatpush2.bf16.msra.mxu0 0
  %1342 = vmatprep.subr.bf16.mxu0 0
  %1343 = vmatpush2.bf16.msra.mxu0 0
  %1344 = vmatprep.subr.bf16.mxu0 0
  %1345 = vmatpush2.bf16.msra.mxu0 0
  %1346 = vmatprep.subr.bf16.mxu0 0
  %1347 = vmatpush2.bf16.msra.mxu0 0
  %1348 = vmatprep.subr.bf16.mxu0 0
  %1349 = vmatpush2.bf16.msra.mxu0 0
  %1350 = vmatprep.mubr.bf16.mxu0 0
  %1351 = vmatmul.mubr.bf16.gmra.mxu0 %v1316
  %v1352 = vpop.f32.mrf.mxu0
  %v1353 = vadd.f32 0.0, %v1352
  %v1354 = vpop.f32.mrf.mxu0
  %v1355 = vpop.f32.mrf.mxu0
  %v1356 = vpop.f32.mrf.mxu0
  %1357 = vdwg.mxu0
  %1358 = vmatprep.subr.bf16.mxu0 0
  %1359 = vmatpush1.bf16.msra.mxu0 0
  %1360 = vmatprep.subr.bf16.mxu0 0
  %1361 = vmatpush1.bf16.msra.mxu0 0
  %1362 = vmatprep.subr.bf16.mxu0 0
  %1363 = vmatpush1.bf16.msra.mxu0 0
  %1364 = vmatprep.subr.bf16.mxu0 0
  %1365 = vmatpush1.bf16.msra.mxu0 0
  %1366 = vmatprep.subr.bf16.mxu0 0
  %1367 = vmatpush1.bf16.msra.mxu0 0
  %1368 = vmatprep.subr.bf16.mxu0 0
  %1369 = vmatpush1.bf16.msra.mxu0 0
  %1370 = vmatprep.subr.bf16.mxu0 0
  %1371 = vmatpush1.bf16.msra.mxu0 %v309
  %1372 = vmatprep.subr.bf16.mxu0 0
  %1373 = vmatpush1.bf16.msra.mxu0 %v308
  %1374 = vmatprep.subr.bf16.mxu0 0
  %1375 = vmatpush2.bf16.msra.mxu0 0
  %1376 = vmatprep.subr.bf16.mxu0 0
  %1377 = vmatpush2.bf16.msra.mxu0 0
  %1378 = vmatprep.subr.bf16.mxu0 0
  %1379 = vmatpush2.bf16.msra.mxu0 0
  %1380 = vmatprep.subr.bf16.mxu0 0
  %1381 = vmatpush2.bf16.msra.mxu0 0
  %1382 = vmatprep.subr.bf16.mxu0 0
  %1383 = vmatpush2.bf16.msra.mxu0 0
  %1384 = vmatprep.subr.bf16.mxu0 0
  %1385 = vmatpush2.bf16.msra.mxu0 0
  %1386 = vmatprep.subr.bf16.mxu0 0
  %1387 = vmatpush2.bf16.msra.mxu0 0
  %1388 = vmatprep.subr.bf16.mxu0 0
  %1389 = vmatpush2.bf16.msra.mxu0 0
  %1390 = vmatprep.mubr.bf16.mxu0 0
  %1391 = vmatmul.mubr.bf16.gmra.mxu0 %v1270
  %v1392 = vpop.f32.mrf.mxu0
  %v1393 = vadd.f32 %v1353, %v1392
  %v1394 = vpop.f32.mrf.mxu0
  %v1395 = vpop.f32.mrf.mxu0
  %v1396 = vpop.f32.mrf.mxu0
  %1397 = vdwg.mxu0
  %v1398 = vadd.f32 %v1393, %v24
  %v1399 = vtanh.pop %v1398
  %v1400 = vpack.c.bf16 %v1399, %v1399
  %v1402 = vsel %vm121, %v1264, 0
  %1404 = vmatprep.subr.bf16.mxu0 0
  %1405 = vmatpush1.bf16.msra.mxu0 0
  %1406 = vmatprep.subr.bf16.mxu0 0
  %1407 = vmatpush1.bf16.msra.mxu0 0
  %1408 = vmatprep.subr.bf16.mxu0 0
  %1409 = vmatpush1.bf16.msra.mxu0 0
  %1410 = vmatprep.subr.bf16.mxu0 0
  %1411 = vmatpush1.bf16.msra.mxu0 0
  %1412 = vmatprep.subr.bf16.mxu0 0
  %1413 = vmatpush1.bf16.msra.mxu0 0
  %1414 = vmatprep.subr.bf16.mxu0 0
  %1415 = vmatpush1.bf16.msra.mxu0 0
  %1416 = vmatprep.subr.bf16.mxu0 0
  %1417 = vmatpush1.bf16.msra.mxu0 %v498
  %1418 = vmatprep.subr.bf16.mxu0 0
  %1419 = vmatpush1.bf16.msra.mxu0 %v497
  %1420 = vmatprep.subr.bf16.mxu0 0
  %1421 = vmatpush2.bf16.msra.mxu0 0
  %1422 = vmatprep.subr.bf16.mxu0 0
  %1423 = vmatpush2.bf16.msra.mxu0 0
  %1424 = vmatprep.subr.bf16.mxu0 0
  %1425 = vmatpush2.bf16.msra.mxu0 0
  %1426 = vmatprep.subr.bf16.mxu0 0
  %1427 = vmatpush2.bf16.msra.mxu0 0
  %1428 = vmatprep.subr.bf16.mxu0 0
  %1429 = vmatpush2.bf16.msra.mxu0 0
  %1430 = vmatprep.subr.bf16.mxu0 0
  %1431 = vmatpush2.bf16.msra.mxu0 0
  %1432 = vmatprep.subr.bf16.mxu0 0
  %1433 = vmatpush2.bf16.msra.mxu0 0
  %1434 = vmatprep.subr.bf16.mxu0 0
  %1435 = vmatpush2.bf16.msra.mxu0 0
  %1436 = vmatprep.mubr.bf16.mxu0 0
  %1437 = vmatmul.mubr.bf16.gmra.mxu0 %v1402
  %v1438 = vpop.f32.mrf.mxu0
  %v1439 = vadd.f32 0.0, %v1438
  %v1440 = vpop.f32.mrf.mxu0
  %v1441 = vpop.f32.mrf.mxu0
  %v1442 = vpop.f32.mrf.mxu0
  %1443 = vdwg.mxu0
  %1444 = vmatprep.subr.bf16.mxu0 0
  %1445 = vmatpush1.bf16.msra.mxu0 0
  %1446 = vmatprep.subr.bf16.mxu0 0
  %1447 = vmatpush1.bf16.msra.mxu0 0
  %1448 = vmatprep.subr.bf16.mxu0 0
  %1449 = vmatpush1.bf16.msra.mxu0 0
  %1450 = vmatprep.subr.bf16.mxu0 0
  %1451 = vmatpush1.bf16.msra.mxu0 0
  %1452 = vmatprep.subr.bf16.mxu0 0
  %1453 = vmatpush1.bf16.msra.mxu0 0
  %1454 = vmatprep.subr.bf16.mxu0 0
  %1455 = vmatpush1.bf16.msra.mxu0 0
  %1456 = vmatprep.subr.bf16.mxu0 0
  %1457 = vmatpush1.bf16.msra.mxu0 %v553
  %1458 = vmatprep.subr.bf16.mxu0 0
  %1459 = vmatpush1.bf16.msra.mxu0 %v552
  %1460 = vmatprep.subr.bf16.mxu0 0
  %1461 = vmatpush2.bf16.msra.mxu0 0
  %1462 = vmatprep.subr.bf16.mxu0 0
  %1463 = vmatpush2.bf16.msra.mxu0 0
  %1464 = vmatprep.subr.bf16.mxu0 0
  %1465 = vmatpush2.bf16.msra.mxu0 0
  %1466 = vmatprep.subr.bf16.mxu0 0
  %1467 = vmatpush2.bf16.msra.mxu0 0
  %1468 = vmatprep.subr.bf16.mxu0 0
  %1469 = vmatpush2.bf16.msra.mxu0 0
  %1470 = vmatprep.subr.bf16.mxu0 0
  %1471 = vmatpush2.bf16.msra.mxu0 0
  %1472 = vmatprep.subr.bf16.mxu0 0
  %1473 = vmatpush2.bf16.msra.mxu0 0
  %1474 = vmatprep.subr.bf16.mxu0 0
  %1475 = vmatpush2.bf16.msra.mxu0 0
  %1476 = vmatprep.mubr.bf16.mxu0 0
  %1477 = vmatmul.mubr.bf16.gmra.mxu0 %v1316
  %v1478 = vpop.f32.mrf.mxu0
  %v1479 = vadd.f32 %v1439, %v1478
  %v1480 = vpop.f32.mrf.mxu0
  %v1481 = vpop.f32.mrf.mxu0
  %v1482 = vpop.f32.mrf.mxu0
  %1483 = vdwg.mxu0
  %v1484 = vadd.f32 %v1479, %v28
  %v1485 = vtanh.pop %v1484
  %v1486 = vpack.c.bf16 %v1485, %v1485
  %s1487 = scalar_lea.vmem [#allocation3], 16
  %1488 = vst.msk [vmem:[%s1487] sm:$0xf] %vm599, %v1486
  %s1489 = scalar_lea.vmem [#allocation2], 56
  %v1490 = vld [vmem:[%s1489] sm:$0xff]
  %v1492 = vsel %vm121, %v1314, 0
  %1494 = vmatprep.subr.bf16.mxu0 0
  %1495 = vmatpush1.bf16.msra.mxu0 0
  %1496 = vmatprep.subr.bf16.mxu0 0
  %1497 = vmatpush1.bf16.msra.mxu0 0
  %1498 = vmatprep.subr.bf16.mxu0 0
  %1499 = vmatpush1.bf16.msra.mxu0 0
  %1500 = vmatprep.subr.bf16.mxu0 0
  %1501 = vmatpush1.bf16.msra.mxu0 0
  %1502 = vmatprep.subr.bf16.mxu0 0
  %1503 = vmatpush1.bf16.msra.mxu0 0
  %1504 = vmatprep.subr.bf16.mxu0 0
  %1505 = vmatpush1.bf16.msra.mxu0 0
  %1506 = vmatprep.subr.bf16.mxu0 0
  %1507 = vmatpush1.bf16.msra.mxu0 %v148
  %1508 = vmatprep.subr.bf16.mxu0 0
  %1509 = vmatpush1.bf16.msra.mxu0 %v147
  %1510 = vmatprep.subr.bf16.mxu0 0
  %1511 = vmatpush2.bf16.msra.mxu0 0
  %1512 = vmatprep.subr.bf16.mxu0 0
  %1513 = vmatpush2.bf16.msra.mxu0 0
  %1514 = vmatprep.subr.bf16.mxu0 0
  %1515 = vmatpush2.bf16.msra.mxu0 0
  %1516 = vmatprep.subr.bf16.mxu0 0
  %1517 = vmatpush2.bf16.msra.mxu0 0
  %1518 = vmatprep.subr.bf16.mxu0 0
  %1519 = vmatpush2.bf16.msra.mxu0 0
  %1520 = vmatprep.subr.bf16.mxu0 0
  %1521 = vmatpush2.bf16.msra.mxu0 0
  %1522 = vmatprep.subr.bf16.mxu0 0
  %1523 = vmatpush2.bf16.msra.mxu0 0
  %1524 = vmatprep.subr.bf16.mxu0 0
  %1525 = vmatpush2.bf16.msra.mxu0 0
  %1526 = vmatprep.mubr.bf16.mxu0 0
  %1527 = vmatmul.mubr.bf16.gmra.mxu0 %v1492
  %v1528 = vpop.f32.mrf.mxu0
  %v1529 = vadd.f32 0.0, %v1528
  %v1530 = vpop.f32.mrf.mxu0
  %v1531 = vpop.f32.mrf.mxu0
  %v1532 = vpop.f32.mrf.mxu0
  %1533 = vdwg.mxu0
  %v1534 = vadd.f32 %v1490, %v1529
  %v1535 = vtanh.pop %v1534
  %v1536 = vpack.c.bf16 %v1535, %v1535
  %v1538 = vsel %vm121, %v1400, 0
  %1540 = vmatprep.subr.bf16.mxu0 0
  %1541 = vmatpush1.bf16.msra.mxu0 0
  %1542 = vmatprep.subr.bf16.mxu0 0
  %1543 = vmatpush1.bf16.msra.mxu0 0
  %1544 = vmatprep.subr.bf16.mxu0 0
  %1545 = vmatpush1.bf16.msra.mxu0 0
  %1546 = vmatprep.subr.bf16.mxu0 0
  %1547 = vmatpush1.bf16.msra.mxu0 0
  %1548 = vmatprep.subr.bf16.mxu0 0
  %1549 = vmatpush1.bf16.msra.mxu0 0
  %1550 = vmatprep.subr.bf16.mxu0 0
  %1551 = vmatpush1.bf16.msra.mxu0 0
  %1552 = vmatprep.subr.bf16.mxu0 0
  %1553 = vmatpush1.bf16.msra.mxu0 %v254
  %1554 = vmatprep.subr.bf16.mxu0 0
  %1555 = vmatpush1.bf16.msra.mxu0 %v253
  %1556 = vmatprep.subr.bf16.mxu0 0
  %1557 = vmatpush2.bf16.msra.mxu0 0
  %1558 = vmatprep.subr.bf16.mxu0 0
  %1559 = vmatpush2.bf16.msra.mxu0 0
  %1560 = vmatprep.subr.bf16.mxu0 0
  %1561 = vmatpush2.bf16.msra.mxu0 0
  %1562 = vmatprep.subr.bf16.mxu0 0
  %1563 = vmatpush2.bf16.msra.mxu0 0
  %1564 = vmatprep.subr.bf16.mxu0 0
  %1565 = vmatpush2.bf16.msra.mxu0 0
  %1566 = vmatprep.subr.bf16.mxu0 0
  %1567 = vmatpush2.bf16.msra.mxu0 0
  %1568 = vmatprep.subr.bf16.mxu0 0
  %1569 = vmatpush2.bf16.msra.mxu0 0
  %1570 = vmatprep.subr.bf16.mxu0 0
  %1571 = vmatpush2.bf16.msra.mxu0 0
  %1572 = vmatprep.mubr.bf16.mxu0 0
  %1573 = vmatmul.mubr.bf16.gmra.mxu0 %v1538
  %v1574 = vpop.f32.mrf.mxu0
  %v1575 = vadd.f32 0.0, %v1574
  %v1576 = vpop.f32.mrf.mxu0
  %v1577 = vpop.f32.mrf.mxu0
  %v1578 = vpop.f32.mrf.mxu0
  %1579 = vdwg.mxu0
  %1580 = vmatprep.subr.bf16.mxu0 0
  %1581 = vmatpush1.bf16.msra.mxu0 0
  %1582 = vmatprep.subr.bf16.mxu0 0
  %1583 = vmatpush1.bf16.msra.mxu0 0
  %1584 = vmatprep.subr.bf16.mxu0 0
  %1585 = vmatpush1.bf16.msra.mxu0 0
  %1586 = vmatprep.subr.bf16.mxu0 0
  %1587 = vmatpush1.bf16.msra.mxu0 0
  %1588 = vmatprep.subr.bf16.mxu0 0
  %1589 = vmatpush1.bf16.msra.mxu0 0
  %1590 = vmatprep.subr.bf16.mxu0 0
  %1591 = vmatpush1.bf16.msra.mxu0 0
  %1592 = vmatprep.subr.bf16.mxu0 0
  %1593 = vmatpush1.bf16.msra.mxu0 %v309
  %1594 = vmatprep.subr.bf16.mxu0 0
  %1595 = vmatpush1.bf16.msra.mxu0 %v308
  %1596 = vmatprep.subr.bf16.mxu0 0
  %1597 = vmatpush2.bf16.msra.mxu0 0
  %1598 = vmatprep.subr.bf16.mxu0 0
  %1599 = vmatpush2.bf16.msra.mxu0 0
  %1600 = vmatprep.subr.bf16.mxu0 0
  %1601 = vmatpush2.bf16.msra.mxu0 0
  %1602 = vmatprep.subr.bf16.mxu0 0
  %1603 = vmatpush2.bf16.msra.mxu0 0
  %1604 = vmatprep.subr.bf16.mxu0 0
  %1605 = vmatpush2.bf16.msra.mxu0 0
  %1606 = vmatprep.subr.bf16.mxu0 0
  %1607 = vmatpush2.bf16.msra.mxu0 0
  %1608 = vmatprep.subr.bf16.mxu0 0
  %1609 = vmatpush2.bf16.msra.mxu0 0
  %1610 = vmatprep.subr.bf16.mxu0 0
  %1611 = vmatpush2.bf16.msra.mxu0 0
  %1612 = vmatprep.mubr.bf16.mxu0 0
  %1613 = vmatmul.mubr.bf16.gmra.mxu0 %v1492
  %v1614 = vpop.f32.mrf.mxu0
  %v1615 = vadd.f32 %v1575, %v1614
  %v1616 = vpop.f32.mrf.mxu0
  %v1617 = vpop.f32.mrf.mxu0
  %v1618 = vpop.f32.mrf.mxu0
  %1619 = vdwg.mxu0
  %v1620 = vadd.f32 %v1615, %v24
  %v1621 = vtanh.pop %v1620
  %v1622 = vpack.c.bf16 %v1621, %v1621
  %v1624 = vsel %vm121, %v1486, 0
  %1626 = vmatprep.subr.bf16.mxu0 0
  %1627 = vmatpush1.bf16.msra.mxu0 0
  %1628 = vmatprep.subr.bf16.mxu0 0
  %1629 = vmatpush1.bf16.msra.mxu0 0
  %1630 = vmatprep.subr.bf16.mxu0 0
  %1631 = vmatpush1.bf16.msra.mxu0 0
  %1632 = vmatprep.subr.bf16.mxu0 0
  %1633 = vmatpush1.bf16.msra.mxu0 0
  %1634 = vmatprep.subr.bf16.mxu0 0
  %1635 = vmatpush1.bf16.msra.mxu0 0
  %1636 = vmatprep.subr.bf16.mxu0 0
  %1637 = vmatpush1.bf16.msra.mxu0 0
  %1638 = vmatprep.subr.bf16.mxu0 0
  %1639 = vmatpush1.bf16.msra.mxu0 %v498
  %1640 = vmatprep.subr.bf16.mxu0 0
  %1641 = vmatpush1.bf16.msra.mxu0 %v497
  %1642 = vmatprep.subr.bf16.mxu0 0
  %1643 = vmatpush2.bf16.msra.mxu0 0
  %1644 = vmatprep.subr.bf16.mxu0 0
  %1645 = vmatpush2.bf16.msra.mxu0 0
  %1646 = vmatprep.subr.bf16.mxu0 0
  %1647 = vmatpush2.bf16.msra.mxu0 0
  %1648 = vmatprep.subr.bf16.mxu0 0
  %1649 = vmatpush2.bf16.msra.mxu0 0
  %1650 = vmatprep.subr.bf16.mxu0 0
  %1651 = vmatpush2.bf16.msra.mxu0 0
  %1652 = vmatprep.subr.bf16.mxu0 0
  %1653 = vmatpush2.bf16.msra.mxu0 0
  %1654 = vmatprep.subr.bf16.mxu0 0
  %1655 = vmatpush2.bf16.msra.mxu0 0
  %1656 = vmatprep.subr.bf16.mxu0 0
  %1657 = vmatpush2.bf16.msra.mxu0 0
  %1658 = vmatprep.mubr.bf16.mxu0 0
  %1659 = vmatmul.mubr.bf16.gmra.mxu0 %v1624
  %v1660 = vpop.f32.mrf.mxu0
  %v1661 = vadd.f32 0.0, %v1660
  %v1662 = vpop.f32.mrf.mxu0
  %v1663 = vpop.f32.mrf.mxu0
  %v1664 = vpop.f32.mrf.mxu0
  %1665 = vdwg.mxu0
  %1666 = vmatprep.subr.bf16.mxu0 0
  %1667 = vmatpush1.bf16.msra.mxu0 0
  %1668 = vmatprep.subr.bf16.mxu0 0
  %1669 = vmatpush1.bf16.msra.mxu0 0
  %1670 = vmatprep.subr.bf16.mxu0 0
  %1671 = vmatpush1.bf16.msra.mxu0 0
  %1672 = vmatprep.subr.bf16.mxu0 0
  %1673 = vmatpush1.bf16.msra.mxu0 0
  %1674 = vmatprep.subr.bf16.mxu0 0
  %1675 = vmatpush1.bf16.msra.mxu0 0
  %1676 = vmatprep.subr.bf16.mxu0 0
  %1677 = vmatpush1.bf16.msra.mxu0 0
  %1678 = vmatprep.subr.bf16.mxu0 0
  %1679 = vmatpush1.bf16.msra.mxu0 %v553
  %1680 = vmatprep.subr.bf16.mxu0 0
  %1681 = vmatpush1.bf16.msra.mxu0 %v552
  %1682 = vmatprep.subr.bf16.mxu0 0
  %1683 = vmatpush2.bf16.msra.mxu0 0
  %1684 = vmatprep.subr.bf16.mxu0 0
  %1685 = vmatpush2.bf16.msra.mxu0 0
  %1686 = vmatprep.subr.bf16.mxu0 0
  %1687 = vmatpush2.bf16.msra.mxu0 0
  %1688 = vmatprep.subr.bf16.mxu0 0
  %1689 = vmatpush2.bf16.msra.mxu0 0
  %1690 = vmatprep.subr.bf16.mxu0 0
  %1691 = vmatpush2.bf16.msra.mxu0 0
  %1692 = vmatprep.subr.bf16.mxu0 0
  %1693 = vmatpush2.bf16.msra.mxu0 0
  %1694 = vmatprep.subr.bf16.mxu0 0
  %1695 = vmatpush2.bf16.msra.mxu0 0
  %1696 = vmatprep.subr.bf16.mxu0 0
  %1697 = vmatpush2.bf16.msra.mxu0 0
  %1698 = vmatprep.mubr.bf16.mxu0 0
  %1699 = vmatmul.mubr.bf16.gmra.mxu0 %v1538
  %v1700 = vpop.f32.mrf.mxu0
  %v1701 = vadd.f32 %v1661, %v1700
  %v1702 = vpop.f32.mrf.mxu0
  %v1703 = vpop.f32.mrf.mxu0
  %v1704 = vpop.f32.mrf.mxu0
  %1705 = vdwg.mxu0
  %v1706 = vadd.f32 %v1701, %v28
  %v1707 = vtanh.pop %v1706
  %v1708 = vpack.c.bf16 %v1707, %v1707
  %s1709 = scalar_lea.vmem [#allocation3], 20
  %1710 = vst.msk [vmem:[%s1709] sm:$0xf] %vm599, %v1708
  %v1712 = vsel %vm121, %v1622, 0
  %1714 = vmatprep.subr.bf16.mxu0 0
  %1715 = vmatpush1.bf16.msra.mxu0 0
  %1716 = vmatprep.subr.bf16.mxu0 0
  %1717 = vmatpush1.bf16.msra.mxu0 0
  %1718 = vmatprep.subr.bf16.mxu0 0
  %1719 = vmatpush1.bf16.msra.mxu0 0
  %1720 = vmatprep.subr.bf16.mxu0 0
  %1721 = vmatpush1.bf16.msra.mxu0 0
  %1722 = vmatprep.subr.bf16.mxu0 0
  %1723 = vmatpush1.bf16.msra.mxu0 0
  %1724 = vmatprep.subr.bf16.mxu0 0
  %1725 = vmatpush1.bf16.msra.mxu0 0
  %1726 = vmatprep.subr.bf16.mxu0 0
  %1727 = vmatpush1.bf16.msra.mxu0 %v254
  %1728 = vmatprep.subr.bf16.mxu0 0
  %1729 = vmatpush1.bf16.msra.mxu0 %v253
  %1730 = vmatprep.subr.bf16.mxu0 0
  %1731 = vmatpush2.bf16.msra.mxu0 0
  %1732 = vmatprep.subr.bf16.mxu0 0
  %1733 = vmatpush2.bf16.msra.mxu0 0
  %1734 = vmatprep.subr.bf16.mxu0 0
  %1735 = vmatpush2.bf16.msra.mxu0 0
  %1736 = vmatprep.subr.bf16.mxu0 0
  %1737 = vmatpush2.bf16.msra.mxu0 0
  %1738 = vmatprep.subr.bf16.mxu0 0
  %1739 = vmatpush2.bf16.msra.mxu0 0
  %1740 = vmatprep.subr.bf16.mxu0 0
  %1741 = vmatpush2.bf16.msra.mxu0 0
  %1742 = vmatprep.subr.bf16.mxu0 0
  %1743 = vmatpush2.bf16.msra.mxu0 0
  %1744 = vmatprep.subr.bf16.mxu0 0
  %1745 = vmatpush2.bf16.msra.mxu0 0
  %1746 = vmatprep.mubr.bf16.mxu0 0
  %1747 = vmatmul.mubr.bf16.gmra.mxu0 %v1712
  %v1748 = vpop.f32.mrf.mxu0
  %v1749 = vadd.f32 0.0, %v1748
  %v1750 = vpop.f32.mrf.mxu0
  %v1751 = vpop.f32.mrf.mxu0
  %v1752 = vpop.f32.mrf.mxu0
  %1753 = vdwg.mxu0
  %v1755 = vsel %vm121, %v1536, 0
  %1757 = vmatprep.subr.bf16.mxu0 0
  %1758 = vmatpush1.bf16.msra.mxu0 0
  %1759 = vmatprep.subr.bf16.mxu0 0
  %1760 = vmatpush1.bf16.msra.mxu0 0
  %1761 = vmatprep.subr.bf16.mxu0 0
  %1762 = vmatpush1.bf16.msra.mxu0 0
  %1763 = vmatprep.subr.bf16.mxu0 0
  %1764 = vmatpush1.bf16.msra.mxu0 0
  %1765 = vmatprep.subr.bf16.mxu0 0
  %1766 = vmatpush1.bf16.msra.mxu0 0
  %1767 = vmatprep.subr.bf16.mxu0 0
  %1768 = vmatpush1.bf16.msra.mxu0 0
  %1769 = vmatprep.subr.bf16.mxu0 0
  %1770 = vmatpush1.bf16.msra.mxu0 %v309
  %1771 = vmatprep.subr.bf16.mxu0 0
  %1772 = vmatpush1.bf16.msra.mxu0 %v308
  %1773 = vmatprep.subr.bf16.mxu0 0
  %1774 = vmatpush2.bf16.msra.mxu0 0
  %1775 = vmatprep.subr.bf16.mxu0 0
  %1776 = vmatpush2.bf16.msra.mxu0 0
  %1777 = vmatprep.subr.bf16.mxu0 0
  %1778 = vmatpush2.bf16.msra.mxu0 0
  %1779 = vmatprep.subr.bf16.mxu0 0
  %1780 = vmatpush2.bf16.msra.mxu0 0
  %1781 = vmatprep.subr.bf16.mxu0 0
  %1782 = vmatpush2.bf16.msra.mxu0 0
  %1783 = vmatprep.subr.bf16.mxu0 0
  %1784 = vmatpush2.bf16.msra.mxu0 0
  %1785 = vmatprep.subr.bf16.mxu0 0
  %1786 = vmatpush2.bf16.msra.mxu0 0
  %1787 = vmatprep.subr.bf16.mxu0 0
  %1788 = vmatpush2.bf16.msra.mxu0 0
  %1789 = vmatprep.mubr.bf16.mxu0 0
  %1790 = vmatmul.mubr.bf16.gmra.mxu0 %v1755
  %v1791 = vpop.f32.mrf.mxu0
  %v1792 = vadd.f32 %v1749, %v1791
  %v1793 = vpop.f32.mrf.mxu0
  %v1794 = vpop.f32.mrf.mxu0
  %v1795 = vpop.f32.mrf.mxu0
  %1796 = vdwg.mxu0
  %v1797 = vadd.f32 %v1792, %v24
  %v1798 = vtanh.pop %v1797
  %v1799 = vpack.c.bf16 %v1798, %v1798
  %v1801 = vsel %vm121, %v1708, 0
  %1803 = vmatprep.subr.bf16.mxu0 0
  %1804 = vmatpush1.bf16.msra.mxu0 0
  %1805 = vmatprep.subr.bf16.mxu0 0
  %1806 = vmatpush1.bf16.msra.mxu0 0
  %1807 = vmatprep.subr.bf16.mxu0 0
  %1808 = vmatpush1.bf16.msra.mxu0 0
  %1809 = vmatprep.subr.bf16.mxu0 0
  %1810 = vmatpush1.bf16.msra.mxu0 0
  %1811 = vmatprep.subr.bf16.mxu0 0
  %1812 = vmatpush1.bf16.msra.mxu0 0
  %1813 = vmatprep.subr.bf16.mxu0 0
  %1814 = vmatpush1.bf16.msra.mxu0 0
  %1815 = vmatprep.subr.bf16.mxu0 0
  %1816 = vmatpush1.bf16.msra.mxu0 %v498
  %1817 = vmatprep.subr.bf16.mxu0 0
  %1818 = vmatpush1.bf16.msra.mxu0 %v497
  %1819 = vmatprep.subr.bf16.mxu0 0
  %1820 = vmatpush2.bf16.msra.mxu0 0
  %1821 = vmatprep.subr.bf16.mxu0 0
  %1822 = vmatpush2.bf16.msra.mxu0 0
  %1823 = vmatprep.subr.bf16.mxu0 0
  %1824 = vmatpush2.bf16.msra.mxu0 0
  %1825 = vmatprep.subr.bf16.mxu0 0
  %1826 = vmatpush2.bf16.msra.mxu0 0
  %1827 = vmatprep.subr.bf16.mxu0 0
  %1828 = vmatpush2.bf16.msra.mxu0 0
  %1829 = vmatprep.subr.bf16.mxu0 0
  %1830 = vmatpush2.bf16.msra.mxu0 0
  %1831 = vmatprep.subr.bf16.mxu0 0
  %1832 = vmatpush2.bf16.msra.mxu0 0
  %1833 = vmatprep.subr.bf16.mxu0 0
  %1834 = vmatpush2.bf16.msra.mxu0 0
  %1835 = vmatprep.mubr.bf16.mxu0 0
  %1836 = vmatmul.mubr.bf16.gmra.mxu0 %v1801
  %v1837 = vpop.f32.mrf.mxu0
  %v1838 = vadd.f32 0.0, %v1837
  %v1839 = vpop.f32.mrf.mxu0
  %v1840 = vpop.f32.mrf.mxu0
  %v1841 = vpop.f32.mrf.mxu0
  %1842 = vdwg.mxu0
  %1843 = vmatprep.subr.bf16.mxu0 0
  %1844 = vmatpush1.bf16.msra.mxu0 0
  %1845 = vmatprep.subr.bf16.mxu0 0
  %1846 = vmatpush1.bf16.msra.mxu0 0
  %1847 = vmatprep.subr.bf16.mxu0 0
  %1848 = vmatpush1.bf16.msra.mxu0 0
  %1849 = vmatprep.subr.bf16.mxu0 0
  %1850 = vmatpush1.bf16.msra.mxu0 0
  %1851 = vmatprep.subr.bf16.mxu0 0
  %1852 = vmatpush1.bf16.msra.mxu0 0
  %1853 = vmatprep.subr.bf16.mxu0 0
  %1854 = vmatpush1.bf16.msra.mxu0 0
  %1855 = vmatprep.subr.bf16.mxu0 0
  %1856 = vmatpush1.bf16.msra.mxu0 %v553
  %1857 = vmatprep.subr.bf16.mxu0 0
  %1858 = vmatpush1.bf16.msra.mxu0 %v552
  %1859 = vmatprep.subr.bf16.mxu0 0
  %1860 = vmatpush2.bf16.msra.mxu0 0
  %1861 = vmatprep.subr.bf16.mxu0 0
  %1862 = vmatpush2.bf16.msra.mxu0 0
  %1863 = vmatprep.subr.bf16.mxu0 0
  %1864 = vmatpush2.bf16.msra.mxu0 0
  %1865 = vmatprep.subr.bf16.mxu0 0
  %1866 = vmatpush2.bf16.msra.mxu0 0
  %1867 = vmatprep.subr.bf16.mxu0 0
  %1868 = vmatpush2.bf16.msra.mxu0 0
  %1869 = vmatprep.subr.bf16.mxu0 0
  %1870 = vmatpush2.bf16.msra.mxu0 0
  %1871 = vmatprep.subr.bf16.mxu0 0
  %1872 = vmatpush2.bf16.msra.mxu0 0
  %1873 = vmatprep.subr.bf16.mxu0 0
  %1874 = vmatpush2.bf16.msra.mxu0 0
  %1875 = vmatprep.mubr.bf16.mxu0 0
  %1876 = vmatmul.mubr.bf16.gmra.mxu0 %v1712
  %v1877 = vpop.f32.mrf.mxu0
  %v1878 = vadd.f32 %v1838, %v1877
  %v1879 = vpop.f32.mrf.mxu0
  %v1880 = vpop.f32.mrf.mxu0
  %v1881 = vpop.f32.mrf.mxu0
  %1882 = vdwg.mxu0
  %v1883 = vadd.f32 %v1878, %v28
  %v1884 = vtanh.pop %v1883
  %v1885 = vpack.c.bf16 %v1884, %v1884
  %s1886 = scalar_lea.vmem [#allocation3], 24
  %1887 = vst.msk [vmem:[%s1886] sm:$0xf] %vm599, %v1885
  %v1889 = vsel %vm121, %v1885, 0
  %1891 = vmatprep.subr.bf16.mxu0 0
  %1892 = vmatpush1.bf16.msra.mxu0 0
  %1893 = vmatprep.subr.bf16.mxu0 0
  %1894 = vmatpush1.bf16.msra.mxu0 0
  %1895 = vmatprep.subr.bf16.mxu0 0
  %1896 = vmatpush1.bf16.msra.mxu0 0
  %1897 = vmatprep.subr.bf16.mxu0 0
  %1898 = vmatpush1.bf16.msra.mxu0 0
  %1899 = vmatprep.subr.bf16.mxu0 0
  %1900 = vmatpush1.bf16.msra.mxu0 0
  %1901 = vmatprep.subr.bf16.mxu0 0
  %1902 = vmatpush1.bf16.msra.mxu0 0
  %1903 = vmatprep.subr.bf16.mxu0 0
  %1904 = vmatpush1.bf16.msra.mxu0 %v498
  %1905 = vmatprep.subr.bf16.mxu0 0
  %1906 = vmatpush1.bf16.msra.mxu0 %v497
  %1907 = vmatprep.subr.bf16.mxu0 0
  %1908 = vmatpush2.bf16.msra.mxu0 0
  %1909 = vmatprep.subr.bf16.mxu0 0
  %1910 = vmatpush2.bf16.msra.mxu0 0
  %1911 = vmatprep.subr.bf16.mxu0 0
  %1912 = vmatpush2.bf16.msra.mxu0 0
  %1913 = vmatprep.subr.bf16.mxu0 0
  %1914 = vmatpush2.bf16.msra.mxu0 0
  %1915 = vmatprep.subr.bf16.mxu0 0
  %1916 = vmatpush2.bf16.msra.mxu0 0
  %1917 = vmatprep.subr.bf16.mxu0 0
  %1918 = vmatpush2.bf16.msra.mxu0 0
  %1919 = vmatprep.subr.bf16.mxu0 0
  %1920 = vmatpush2.bf16.msra.mxu0 0
  %1921 = vmatprep.subr.bf16.mxu0 0
  %1922 = vmatpush2.bf16.msra.mxu0 0
  %1923 = vmatprep.mubr.bf16.mxu0 0
  %1924 = vmatmul.mubr.bf16.gmra.mxu0 %v1889
  %v1925 = vpop.f32.mrf.mxu0
  %v1926 = vadd.f32 0.0, %v1925
  %v1927 = vpop.f32.mrf.mxu0
  %v1928 = vpop.f32.mrf.mxu0
  %v1929 = vpop.f32.mrf.mxu0
  %1930 = vdwg.mxu0
  %v1932 = vsel %vm121, %v1799, 0
  %1934 = vmatprep.subr.bf16.mxu0 0
  %1935 = vmatpush1.bf16.msra.mxu0 0
  %1936 = vmatprep.subr.bf16.mxu0 0
  %1937 = vmatpush1.bf16.msra.mxu0 0
  %1938 = vmatprep.subr.bf16.mxu0 0
  %1939 = vmatpush1.bf16.msra.mxu0 0
  %1940 = vmatprep.subr.bf16.mxu0 0
  %1941 = vmatpush1.bf16.msra.mxu0 0
  %1942 = vmatprep.subr.bf16.mxu0 0
  %1943 = vmatpush1.bf16.msra.mxu0 0
  %1944 = vmatprep.subr.bf16.mxu0 0
  %1945 = vmatpush1.bf16.msra.mxu0 0
  %1946 = vmatprep.subr.bf16.mxu0 0
  %1947 = vmatpush1.bf16.msra.mxu0 %v553
  %1948 = vmatprep.subr.bf16.mxu0 0
  %1949 = vmatpush1.bf16.msra.mxu0 %v552
  %1950 = vmatprep.subr.bf16.mxu0 0
  %1951 = vmatpush2.bf16.msra.mxu0 0
  %1952 = vmatprep.subr.bf16.mxu0 0
  %1953 = vmatpush2.bf16.msra.mxu0 0
  %1954 = vmatprep.subr.bf16.mxu0 0
  %1955 = vmatpush2.bf16.msra.mxu0 0
  %1956 = vmatprep.subr.bf16.mxu0 0
  %1957 = vmatpush2.bf16.msra.mxu0 0
  %1958 = vmatprep.subr.bf16.mxu0 0
  %1959 = vmatpush2.bf16.msra.mxu0 0
  %1960 = vmatprep.subr.bf16.mxu0 0
  %1961 = vmatpush2.bf16.msra.mxu0 0
  %1962 = vmatprep.subr.bf16.mxu0 0
  %1963 = vmatpush2.bf16.msra.mxu0 0
  %1964 = vmatprep.subr.bf16.mxu0 0
  %1965 = vmatpush2.bf16.msra.mxu0 0
  %1966 = vmatprep.mubr.bf16.mxu0 0
  %1967 = vmatmul.mubr.bf16.gmra.mxu0 %v1932
  %v1968 = vpop.f32.mrf.mxu0
  %v1969 = vadd.f32 %v1926, %v1968
  %v1970 = vpop.f32.mrf.mxu0
  %v1971 = vpop.f32.mrf.mxu0
  %v1972 = vpop.f32.mrf.mxu0
  %1973 = vdwg.mxu0
  %v1974 = vadd.f32 %v1969, %v28
  %v1975 = vtanh.pop %v1974
  %v1976 = vpack.c.bf16 %v1975, %v1975
  %s1977 = scalar_lea.vmem [#allocation3], 28
  %1978 = vst.msk [vmem:[%s1977] sm:$0xf] %vm599, %v1976
  %v1979 = vunpack.c.l.bf16 %v1536
  %1980 = vst.msk [vmem:[%s5] sm:$0xff] %vm121, %v1979
  %v1981 = vunpack.c.l.bf16 %v1799
  %s1982 = scalar_lea.vmem %s5, 8
  %1983 = vst.msk [vmem:[%s1982] sm:$0xff] %vm121, %v1981
  %v1984 = vunpack.c.l.bf16 %v1976
  %s1985 = scalar_lea.vmem %s5, 16
  %1986 = vst.msk [vmem:[%s1985] sm:$0xff] %vm121, %v1984
  %v1987 = vld [vmem:[#allocation3] sm:$0xf]
  %v1988 = vld [vmem:[#allocation3 + $0x4] sm:$0xf]
  %v1989 = vld [vmem:[#allocation3 + $0x8] sm:$0xf]
  %v1990 = vld [vmem:[#allocation3 + $0xc] sm:$0xf]
  %v1991 = vld [vmem:[#allocation3 + $0x10] sm:$0xf]
  %v1992 = vld [vmem:[#allocation3 + $0x14] sm:$0xf]
  %v1993 = vld [vmem:[#allocation3 + $0x18] sm:$0xf]
  %v1994 = vld [vmem:[#allocation3 + $0x1c] sm:$0xf]
  %v1995 = vunpack.c.l.bf16 %v1987
  %v1996 = vunpack.c.l.bf16 %v1988
  %v1997 = vunpack.c.l.bf16 %v1989
  %v1998 = vunpack.c.l.bf16 %v1990
  %v1999 = vunpack.c.l.bf16 %v1991
  %v2000 = vunpack.c.l.bf16 %v1992
  %v2001 = vunpack.c.l.bf16 %v1993
  %v2002 = vunpack.c.l.bf16 %v1994
  %v2003 = vlaneseq
  %v2004 = vshrl.u32 %v2003, 7
  %v2005 = vsub.s32 4, %v2004
  %v2006 = vrot.slane %v20, %v2005
  %v2007 = vmul.f32 %v1995, %v2006
  %v2008 = vmul.f32 %v1996, %v2006
  %v2009 = vmul.f32 %v1997, %v2006
  %v2010 = vmul.f32 %v1998, %v2006
  %v2011 = vmul.f32 %v1999, %v2006
  %v2012 = vmul.f32 %v2000, %v2006
  %v2013 = vmul.f32 %v2001, %v2006
  %v2014 = vmul.f32 %v2002, %v2006
  %v2015 = vsel %vm121, %v2007, 0.0
  %2016 = vadd.xlane.f32.xlu0 %v2015
  %v2017 = vpop.xlane.xlu0 %2016
  %v2018 = vsel %vm121, %v2008, 0.0
  %2019 = vadd.xlane.f32.xlu0 %v2018
  %v2020 = vpop.xlane.xlu0 %2019
  %v2021 = vsel %vm121, %v2009, 0.0
  %2022 = vadd.xlane.f32.xlu0 %v2021
  %v2023 = vpop.xlane.xlu0 %2022
  %v2024 = vsel %vm121, %v2010, 0.0
  %2025 = vadd.xlane.f32.xlu0 %v2024
  %v2026 = vpop.xlane.xlu0 %2025
  %v2027 = vsel %vm121, %v2011, 0.0
  %2028 = vadd.xlane.f32.xlu0 %v2027
  %v2029 = vpop.xlane.xlu0 %2028
  %v2030 = vsel %vm121, %v2012, 0.0
  %2031 = vadd.xlane.f32.xlu0 %v2030
  %v2032 = vpop.xlane.xlu0 %2031
  %v2033 = vsel %vm121, %v2013, 0.0
  %2034 = vadd.xlane.f32.xlu0 %v2033
  %v2035 = vpop.xlane.xlu0 %2034
  %v2036 = vsel %vm121, %v2014, 0.0
  %2037 = vadd.xlane.f32.xlu0 %v2036
  %v2038 = vpop.xlane.xlu0 %2037
  %v2039 = vlaneseq
  %v2040 = vshrl.u32 %v2039, 7
  %v2041 = vsub.s32 5, %v2040
  %v2042 = vrot.slane %v20, %v2041
  %v2043 = vadd.f32 %v2017, %v2042
  %v2044 = vadd.f32 %v2020, %v2042
  %v2045 = vadd.f32 %v2023, %v2042
  %v2046 = vadd.f32 %v2026, %v2042
  %v2047 = vadd.f32 %v2029, %v2042
  %v2048 = vadd.f32 %v2032, %v2042
  %v2049 = vadd.f32 %v2035, %v2042
  %v2050 = vadd.f32 %v2038, %v2042
  %vm2051 = vcmask 7168
  %2052 = vst.msk [vmem:[%s4] sm:$0xff] %vm2051, %v2043
  %2053 = vst.msk [vmem:[%s4 + $0x8] sm:$0xff] %vm2051, %v2044
  %2054 = vst.msk [vmem:[%s4 + $0x10] sm:$0xff] %vm2051, %v2045
  %2055 = vst.msk [vmem:[%s4 + $0x18] sm:$0xff] %vm2051, %v2046
  %2056 = vst.msk [vmem:[%s4 + $0x20] sm:$0xff] %vm2051, %v2047
  %2057 = vst.msk [vmem:[%s4 + $0x28] sm:$0xff] %vm2051, %v2048
  %2058 = vst.msk [vmem:[%s4 + $0x30] sm:$0xff] %vm2051, %v2049
  %2059 = vst.msk [vmem:[%s4 + $0x38] sm:$0xff] %vm2051, %v2050
  // Predicated region
  $region18: #{rnn_forward.1} parent=0 // pred_check
    _
  $region19: #{rnn_forward.1} parent=0 // pred_check_branch
    %2061 = sbr.rel (0) target = $region21
  $region20: #{rnn_forward.1} parent=0 // pred_region
    _
  $region21: #{rnn_forward.1} parent=0 // pred_fallthru
    _
  // Predicated region
  $region22: #{rnn_forward.1} parent=0 // pred_check
    _
  $region23: #{rnn_forward.1} parent=0 // pred_check_branch
    %2063 = sbr.rel (0) target = $region25
  $region24: #{rnn_forward.1} parent=0 // pred_region
    _
  $region25: #{rnn_forward.1} parent=0 // pred_fallthru
    _
  // Predicated region
  $region26: #{rnn_forward.1} parent=0 // pred_check
    _
  $region27: #{rnn_forward.1} parent=0 // pred_check_branch
    %2065 = sbr.rel (0) target = $region29
  $region28: #{rnn_forward.1} parent=0 // pred_region
    _
  $region29: #{rnn_forward.1} parent=0 // pred_fallthru
    _
  // Predicated region
  $region30: #{rnn_forward.1} parent=0 // pred_check
    _
  $region31: #{rnn_forward.1} parent=0 // pred_check_branch
    %2067 = sbr.rel (0) target = $region33
  $region32: #{rnn_forward.1} parent=0 // pred_region
    _
  $region33: #{rnn_forward.1} parent=0 // pred_fallthru
    _

</llo_original>
